<compile_context>
chip_gen: v5e
topology: v5e:2x2
jax: 0.10.0
libtpu: 0.0.40
codegen_flags: <defaults>
</compile_context>

<pallas_src>
import jax
import jax.numpy as jnp
from jax import lax
from jax.experimental import pallas as pl
from jax.experimental.pallas import tpu as pltpu


_INV_SQRT2 = 0.7071067811865476


def _erf_f32(z):
    """float32-accurate erf (Abramowitz & Stegun 7.1.26, |err| <= 1.5e-7).

    Built only from ops guaranteed to lower in Mosaic (abs, mul, add, div, exp,
    select).  exp sits on the EUP slot; the divide stays exact on purpose.
    """
    az = jnp.abs(z)
    t = 1.0 / (1.0 + 0.3275911 * az)
    poly = t * (0.254829592 + t * (-0.284496736 + t * (1.421413741
                + t * (-1.453152027 + t * 1.061405429))))
    e = 1.0 - poly * jnp.exp(-az * az)
    return jnp.where(z < 0.0, -e, e)


def _gelu_exact(v):
    return 0.5 * v * (1.0 + _erf_f32(v * _INV_SQRT2))


def _round_up(v, m):
    return (v + m - 1) // m * m


def feedforward_forward(x_nchw, w_in, w_dw, w_out):
    """Gated-Dconv FFN forward.

    Args:
      x_nchw: (N, C, H, W) float32
      w_in:   (C2, C, 1, 1)  project_in weight  (PyTorch OIHW, C2 = 2*hidden)
      w_dw:   (C2, 1, 3, 3)  depthwise 3x3 conv weight (groups = C2)
      w_out:  (C, Hd, 1, 1)  project_out weight (Hd = hidden)
    Returns:
      (N, C, H, W) float32
    """
    N, C, H, W = x_nchw.shape
    C2 = w_in.shape[0]
    Hd = C2 // 2
    Hp, Wp = H + 2, W + 2            # zero-padded spatial size (3x3 conv, pad=1)
    L = N * Hp * Wp                  # flattened (batch, padded-spatial) length
    SH = Wp + 1                      # largest |tap offset| in flat coordinates

    Lout = _round_up(L, 128)         # lane-dense output width   (648 -> 768)
    Lext = _round_up(Lout + 2 * SH, 128)   # lane-dense extended input (-> 896)
    C2p = _round_up(C2, 8)           # sublane-dense hidden*2 rows (20 -> 24)
    Cop = _round_up(C, 8)            # sublane-dense output rows   (4  -> 8)

    f32 = jnp.float32

    # ---- host-side weight prep: 1x1 convs as dense matrices, zero-padded rows
    w_in_mat = jnp.zeros((C2p, C), f32).at[:C2].set(w_in[:, :, 0, 0].astype(f32))
    w_dw_mat = jnp.zeros((C2p, 9), f32).at[:C2].set(
        w_dw[:, 0].reshape(C2, 9).astype(f32))
    w_out_mat = jnp.zeros((Cop, Hd), f32).at[:C].set(w_out[:, :, 0, 0].astype(f32))

    # ---- host-side input prep: channels-first, spatially zero-padded, flattened,
    # lane-extended (SH leading zeros so every dwconv tap is a static slice,
    # trailing zeros up to the 128-multiple Lext).
    # TODO(synk): at production sizes fuse these passes / zero-fill in-kernel.
    xt = jnp.transpose(x_nchw.astype(f32), (1, 0, 2, 3))                  # (C,N,H,W)
    xp = jnp.pad(xt, ((0, 0), (0, 0), (1, 1), (1, 1)))                    # (C,N,Hp,Wp)
    xf = xp.reshape(C, L)                                                 # (C, L)
    x_ext = jnp.pad(xf, ((0, 0), (SH, Lext - SH - L)))                    # (C, Lext)

    # static flat-coordinate tap offsets for the 3x3 depthwise stencil
    tap_off = [SH + (a - 1) * Wp + (b - 1) for a in range(3) for b in range(3)]

    def kernel(x_ref, win_ref, wdw_ref, wout_ref, o_ref, h_ref):
        # x_ref:    (C,   Lext)  zero-padded, lane-extended, channels-first input
        # win_ref:  (C2p, C)     project_in 1x1 weights   (rows >= C2 are zero)
        # wdw_ref:  (C2p, 9)     depthwise 3x3 tap weights, one lane per tap
        # wout_ref: (Cop, Hd)    project_out 1x1 weights  (rows >= C are zero)
        # o_ref:    (Cop, Lout)  output at padded-flat positions (halo is junk)
        # h_ref:    (C2p, Lext)  VMEM scratch: project_in output; its zero halo
        #                        is free because the 1x1 conv is bias-free.

        # project_in: one MXU dot, fully lane/sublane-dense store into scratch
        h_ref[...] = jnp.dot(win_ref[...], x_ref[...],
                             preferred_element_type=jnp.float32)

        # depthwise 3x3: 9 VPU multiply-accumulates over static lane-offset
        # slices, per-row tap weight broadcast along lanes.
        acc = wdw_ref[:, 0:1] * h_ref[:, tap_off[0]:tap_off[0] + Lout]
        for t in range(1, 9):
            s = tap_off[t]
            acc = acc + wdw_ref[:, t:t + 1] * h_ref[:, s:s + Lout]

        # gating: exact-GELU(x1) * x2   (rows [0,Hd) and [Hd,2Hd) of acc)
        g = _gelu_exact(acc[:Hd, :]) * acc[Hd:C2, :]

        # project_out: second MXU dot; lane/sublane-dense output store
        o_ref[...] = jnp.dot(wout_ref[...], g, preferred_element_type=jnp.float32)

    out_flat = pl.pallas_call(
        kernel,
        out_shape=jax.ShapeDtypeStruct((Cop, Lout), f32),
        # single grid step: whole (tiny) batch folded onto the lane axis.
        in_specs=[
            pl.BlockSpec(memory_space=pltpu.MemorySpace.VMEM),   # x_ext
            pl.BlockSpec(memory_space=pltpu.MemorySpace.VMEM),   # w_in_mat
            pl.BlockSpec(memory_space=pltpu.MemorySpace.VMEM),   # w_dw_mat
            pl.BlockSpec(memory_space=pltpu.MemorySpace.VMEM),   # w_out_mat
        ],
        out_specs=pl.BlockSpec(memory_space=pltpu.MemorySpace.VMEM),
        scratch_shapes=[pltpu.VMEM((C2p, Lext), f32)],
    )(x_ext, w_in_mat, w_dw_mat, w_out_mat)

    # drop sublane/lane padding and the padded halo (junk there), back to NCHW
    out = out_flat[:C, :L].reshape(C, N, Hp, Wp)[:, :, 1:H + 1, 1:W + 1]
    return jnp.transpose(out, (1, 0, 2, 3))


def ref_forward(x_nchw, w_in, w_dw, w_out):
    """Pure-JAX reference matching the PyTorch module, NCHW in/out."""
    C2 = w_in.shape[0]
    Hd = C2 // 2
    x = x_nchw.astype(jnp.float32)
    xin = jnp.einsum("nchw,mc->nmhw", x, w_in[:, :, 0, 0])        # project_in
    xd = lax.conv_general_dilated(                                # depthwise 3x3
        xin, w_dw.astype(jnp.float32), (1, 1), "SAME",
        dimension_numbers=("NCHW", "OIHW", "NCHW"),
        feature_group_count=C2)
    x1, x2 = xd[:, :Hd], xd[:, Hd:]
    g = jax.nn.gelu(x1, approximate=False) * x2                   # exact GELU gate
    return jnp.einsum("nmhw,cm->nchw", g, w_out[:, :, 0, 0])      # project_out


if __name__ == "__main__":
    key = jax.random.PRNGKey(0)
    k_x, k_in, k_dw, k_out = jax.random.split(key, 4)

    # module config: n_feat = 4, ffn_expansion_factor = 2.66 -> hidden = 10
    N, C, H, W = 2, 4, 16, 16
    Hd = int(C * 2.66)        # 10
    C2 = 2 * Hd               # 20

    x = jax.random.normal(k_x, (N, C, H, W), jnp.float32)
    w_in = 0.2 * jax.random.normal(k_in, (C2, C, 1, 1), jnp.float32)
    w_dw = 0.2 * jax.random.normal(k_dw, (C2, 1, 3, 3), jnp.float32)
    w_out = 0.2 * jax.random.normal(k_out, (C, Hd, 1, 1), jnp.float32)

    out = jax.jit(feedforward_forward)(x, w_in, w_dw, w_out)
    out = jax.block_until_ready(out)

    ref = ref_forward(x, w_in, w_dw, w_out)
    assert out.shape == (N, C, H, W)
    max_err = float(jnp.max(jnp.abs(out - ref)))
    assert jnp.allclose(out, ref, rtol=1e-4, atol=1e-4), f"mismatch vs reference: {max_err}"

    print("KERNEL_OK")
</pallas_src>

<mosaic_0001>
module attributes {stable_mosaic.version = 11 : i64} {
  func.func @kernel(%arg0: memref<4x896xf32, #tpu.memory_space<vmem>>, %arg1: memref<24x4xf32, #tpu.memory_space<vmem>>, %arg2: memref<24x9xf32, #tpu.memory_space<vmem>>, %arg3: memref<8x10xf32, #tpu.memory_space<vmem>>, %arg4: memref<8x768xf32, #tpu.memory_space<vmem>>, %arg5: memref<24x896xf32, #tpu.memory_space<vmem>>) attributes {dimension_semantics = [], scalar_prefetch = 0 : i64, scratch_operands = 1 : i64, tpu.core_type = #tpu.core_type<tc>} {
    %c0 = arith.constant 0 : index
    %c0_0 = arith.constant 0 : index
    %0 = vector.load %arg1[%c0, %c0_0] : memref<24x4xf32, #tpu.memory_space<vmem>>, vector<24x4xf32>
    %c0_1 = arith.constant 0 : index
    %c0_2 = arith.constant 0 : index
    %1 = vector.load %arg0[%c0_1, %c0_2] : memref<4x896xf32, #tpu.memory_space<vmem>>, vector<4x896xf32>
    %cst = arith.constant dense<0.000000e+00> : vector<24x896xf32>
    %2 = tpu.matmul %0, %1, %cst {dimension_numbers = #tpu.dot_dimension_numbers<[1], [0], [0], [1], [0, 0, 1, 1], [], []>} : vector<24x4xf32>, vector<4x896xf32>, vector<24x896xf32> -> vector<24x896xf32>
    %c0_3 = arith.constant 0 : index
    %c0_4 = arith.constant 0 : index
    %3 = vector.load %arg5[%c0_3, %c0_4] : memref<24x896xf32, #tpu.memory_space<vmem>>, vector<24x896xf32>
    tpu.vector_store %arg5[%c0_3, %c0_4], %2 {strides = array<i32>} : memref<24x896xf32, #tpu.memory_space<vmem>>, vector<24x896xf32>,
    %c0_5 = arith.constant 0 : index
    %c0_6 = arith.constant 0 : index
    %4 = vector.load %arg2[%c0_5, %c0_6] : memref<24x9xf32, #tpu.memory_space<vmem>>, vector<24x1xf32>
    %c0_7 = arith.constant 0 : index
    %c0_8 = arith.constant 0 : index
    %5 = vector.load %arg5[%c0_7, %c0_8] : memref<24x896xf32, #tpu.memory_space<vmem>>, vector<24x768xf32>
    %6 = vector.broadcast %4 : vector<24x1xf32> to vector<24x768xf32>
    %7 = arith.mulf %6, %5 : vector<24x768xf32>
    %c0_9 = arith.constant 0 : index
    %c1 = arith.constant 1 : index
    %8 = vector.load %arg2[%c0_9, %c1] : memref<24x9xf32, #tpu.memory_space<vmem>>, vector<24x1xf32>
    %c0_10 = arith.constant 0 : index
    %c1_11 = arith.constant 1 : index
    %9 = vector.load %arg5[%c0_10, %c1_11] : memref<24x896xf32, #tpu.memory_space<vmem>>, vector<24x768xf32>
    %10 = vector.broadcast %8 : vector<24x1xf32> to vector<24x768xf32>
    %11 = arith.mulf %10, %9 : vector<24x768xf32>
    %12 = arith.addf %7, %11 : vector<24x768xf32>
    %c0_12 = arith.constant 0 : index
    %c2 = arith.constant 2 : index
    %13 = vector.load %arg2[%c0_12, %c2] : memref<24x9xf32, #tpu.memory_space<vmem>>, vector<24x1xf32>
    %c0_13 = arith.constant 0 : index
    %c2_14 = arith.constant 2 : index
    %14 = vector.load %arg5[%c0_13, %c2_14] : memref<24x896xf32, #tpu.memory_space<vmem>>, vector<24x768xf32>
    %15 = vector.broadcast %13 : vector<24x1xf32> to vector<24x768xf32>
    %16 = arith.mulf %15, %14 : vector<24x768xf32>
    %17 = arith.addf %12, %16 : vector<24x768xf32>
    %c0_15 = arith.constant 0 : index
    %c3 = arith.constant 3 : index
    %18 = vector.load %arg2[%c0_15, %c3] : memref<24x9xf32, #tpu.memory_space<vmem>>, vector<24x1xf32>
    %c0_16 = arith.constant 0 : index
    %c18 = arith.constant 18 : index
    %19 = vector.load %arg5[%c0_16, %c18] : memref<24x896xf32, #tpu.memory_space<vmem>>, vector<24x768xf32>
    %20 = vector.broadcast %18 : vector<24x1xf32> to vector<24x768xf32>
    %21 = arith.mulf %20, %19 : vector<24x768xf32>
    %22 = arith.addf %17, %21 : vector<24x768xf32>
    %c0_17 = arith.constant 0 : index
    %c4 = arith.constant 4 : index
    %23 = vector.load %arg2[%c0_17, %c4] : memref<24x9xf32, #tpu.memory_space<vmem>>, vector<24x1xf32>
    %c0_18 = arith.constant 0 : index
    %c19 = arith.constant 19 : index
    %24 = vector.load %arg5[%c0_18, %c19] : memref<24x896xf32, #tpu.memory_space<vmem>>, vector<24x768xf32>
    %25 = vector.broadcast %23 : vector<24x1xf32> to vector<24x768xf32>
    %26 = arith.mulf %25, %24 : vector<24x768xf32>
    %27 = arith.addf %22, %26 : vector<24x768xf32>
    %c0_19 = arith.constant 0 : index
    %c5 = arith.constant 5 : index
    %28 = vector.load %arg2[%c0_19, %c5] : memref<24x9xf32, #tpu.memory_space<vmem>>, vector<24x1xf32>
    %c0_20 = arith.constant 0 : index
    %c20 = arith.constant 20 : index
    %29 = vector.load %arg5[%c0_20, %c20] : memref<24x896xf32, #tpu.memory_space<vmem>>, vector<24x768xf32>
    %30 = vector.broadcast %28 : vector<24x1xf32> to vector<24x768xf32>
    %31 = arith.mulf %30, %29 : vector<24x768xf32>
    %32 = arith.addf %27, %31 : vector<24x768xf32>
    %c0_21 = arith.constant 0 : index
    %c6 = arith.constant 6 : index
    %33 = vector.load %arg2[%c0_21, %c6] : memref<24x9xf32, #tpu.memory_space<vmem>>, vector<24x1xf32>
    %c0_22 = arith.constant 0 : index
    %c36 = arith.constant 36 : index
    %34 = vector.load %arg5[%c0_22, %c36] : memref<24x896xf32, #tpu.memory_space<vmem>>, vector<24x768xf32>
    %35 = vector.broadcast %33 : vector<24x1xf32> to vector<24x768xf32>
    %36 = arith.mulf %35, %34 : vector<24x768xf32>
    %37 = arith.addf %32, %36 : vector<24x768xf32>
    %c0_23 = arith.constant 0 : index
    %c7 = arith.constant 7 : index
    %38 = vector.load %arg2[%c0_23, %c7] : memref<24x9xf32, #tpu.memory_space<vmem>>, vector<24x1xf32>
    %c0_24 = arith.constant 0 : index
    %c37 = arith.constant 37 : index
    %39 = vector.load %arg5[%c0_24, %c37] : memref<24x896xf32, #tpu.memory_space<vmem>>, vector<24x768xf32>
    %40 = vector.broadcast %38 : vector<24x1xf32> to vector<24x768xf32>
    %41 = arith.mulf %40, %39 : vector<24x768xf32>
    %42 = arith.addf %37, %41 : vector<24x768xf32>
    %c0_25 = arith.constant 0 : index
    %c8 = arith.constant 8 : index
    %43 = vector.load %arg2[%c0_25, %c8] : memref<24x9xf32, #tpu.memory_space<vmem>>, vector<24x1xf32>
    %c0_26 = arith.constant 0 : index
    %c38 = arith.constant 38 : index
    %44 = vector.load %arg5[%c0_26, %c38] : memref<24x896xf32, #tpu.memory_space<vmem>>, vector<24x768xf32>
    %45 = vector.broadcast %43 : vector<24x1xf32> to vector<24x768xf32>
    %46 = arith.mulf %45, %44 : vector<24x768xf32>
    %47 = arith.addf %42, %46 : vector<24x768xf32>
    %48 = vector.extract_strided_slice %47 {offsets = [0, 0], sizes = [10, 768], strides = [1, 1]} : vector<24x768xf32> to vector<10x768xf32>
    %cst_27 = arith.constant 5.000000e-01 : f32
    %49 = vector.broadcast %cst_27 : f32 to vector<10x768xf32>
    %50 = arith.mulf %49, %48 : vector<10x768xf32>
    %cst_28 = arith.constant 0.707106769 : f32
    %51 = vector.broadcast %cst_28 : f32 to vector<10x768xf32>
    %52 = arith.mulf %48, %51 : vector<10x768xf32>
    %53 = math.absf %52 : vector<10x768xf32>
    %cst_29 = arith.constant 0.327591091 : f32
    %54 = vector.broadcast %cst_29 : f32 to vector<10x768xf32>
    %55 = arith.mulf %54, %53 : vector<10x768xf32>
    %cst_30 = arith.constant 1.000000e+00 : f32
    %56 = vector.broadcast %cst_30 : f32 to vector<10x768xf32>
    %57 = arith.addf %56, %55 : vector<10x768xf32>
    %cst_31 = arith.constant 1.000000e+00 : f32
    %58 = vector.broadcast %cst_31 : f32 to vector<10x768xf32>
    %59 = arith.divf %58, %57 : vector<10x768xf32>
    %cst_32 = arith.constant 1.06140542 : f32
    %60 = vector.broadcast %cst_32 : f32 to vector<10x768xf32>
    %61 = arith.mulf %59, %60 : vector<10x768xf32>
    %cst_33 = arith.constant -1.45315206 : f32
    %62 = vector.broadcast %cst_33 : f32 to vector<10x768xf32>
    %63 = arith.addf %62, %61 : vector<10x768xf32>
    %64 = arith.mulf %59, %63 : vector<10x768xf32>
    %cst_34 = arith.constant 1.42141378 : f32
    %65 = vector.broadcast %cst_34 : f32 to vector<10x768xf32>
    %66 = arith.addf %65, %64 : vector<10x768xf32>
    %67 = arith.mulf %59, %66 : vector<10x768xf32>
    %cst_35 = arith.constant -0.284496725 : f32
    %68 = vector.broadcast %cst_35 : f32 to vector<10x768xf32>
    %69 = arith.addf %68, %67 : vector<10x768xf32>
    %70 = arith.mulf %59, %69 : vector<10x768xf32>
    %cst_36 = arith.constant 0.254829586 : f32
    %71 = vector.broadcast %cst_36 : f32 to vector<10x768xf32>
    %72 = arith.addf %71, %70 : vector<10x768xf32>
    %73 = arith.mulf %59, %72 : vector<10x768xf32>
    %cst_37 = arith.constant 0.000000e+00 : f32
    %74 = vector.broadcast %cst_37 : f32 to vector<10x768xf32>
    %75 = arith.subf %74, %53 : vector<10x768xf32>
    %76 = arith.mulf %75, %53 : vector<10x768xf32>
    %77 = math.exp %76 : vector<10x768xf32>
    %78 = arith.mulf %73, %77 : vector<10x768xf32>
    %cst_38 = arith.constant 1.000000e+00 : f32
    %79 = vector.broadcast %cst_38 : f32 to vector<10x768xf32>
    %80 = arith.subf %79, %78 : vector<10x768xf32>
    %cst_39 = arith.constant 0.000000e+00 : f32
    %81 = vector.broadcast %cst_39 : f32 to vector<10x768xf32>
    %82 = arith.cmpf olt, %52, %81 : vector<10x768xf32>
    %cst_40 = arith.constant 0.000000e+00 : f32
    %83 = vector.broadcast %cst_40 : f32 to vector<10x768xf32>
    %84 = arith.subf %83, %80 : vector<10x768xf32>
    %85 = arith.select %82, %84, %80 : vector<10x768xi1>, vector<10x768xf32>
    %cst_41 = arith.constant 1.000000e+00 : f32
    %86 = vector.broadcast %cst_41 : f32 to vector<10x768xf32>
    %87 = arith.addf %86, %85 : vector<10x768xf32>
    %88 = arith.mulf %50, %87 : vector<10x768xf32>
    %89 = vector.extract_strided_slice %47 {offsets = [10, 0], sizes = [10, 768], strides = [1, 1]} : vector<24x768xf32> to vector<10x768xf32>
    %90 = arith.mulf %88, %89 : vector<10x768xf32>
    %c0_42 = arith.constant 0 : index
    %c0_43 = arith.constant 0 : index
    %91 = vector.load %arg3[%c0_42, %c0_43] : memref<8x10xf32, #tpu.memory_space<vmem>>, vector<8x10xf32>
    %cst_44 = arith.constant dense<0.000000e+00> : vector<8x768xf32>
    %92 = tpu.matmul %91, %90, %cst_44 {dimension_numbers = #tpu.dot_dimension_numbers<[1], [0], [0], [1], [0, 0, 1, 1], [], []>} : vector<8x10xf32>, vector<10x768xf32>, vector<8x768xf32> -> vector<8x768xf32>
    %c0_45 = arith.constant 0 : index
    %c0_46 = arith.constant 0 : index
    %93 = vector.load %arg4[%c0_45, %c0_46] : memref<8x768xf32, #tpu.memory_space<vmem>>, vector<8x768xf32>
    tpu.vector_store %arg4[%c0_45, %c0_46], %92 {strides = array<i32>} : memref<8x768xf32, #tpu.memory_space<vmem>>, vector<8x768xf32>,
    return
  }
}

</mosaic_0001>

<llo_original>
// kernel: feedforward_forward.1
$region0: #{feedforward_forward.1}
  #allocation0 [shape = 'u32[]', space=smem, size = 0x4, offset = 0x4, fixed_abs, tag = 'smem constant byte address 0x4 - core index']
  #allocation1 [shape = 'u32[72,128]{1,0:T(1,128)}', space=vmem, size = 0x9000, scoped, tag = 'internal scratch']
  #allocation2 [shape = 'f32[24,896]{1,0:T(8,128)}', space=vmem, size = 0x15000, scoped, tag = 'scratch operand']
  %s0 = inlined_call_operand.vmem [shape: f32[4,896], index: 0, kind: input, shape index: {}]
  %s1 = inlined_call_operand.vmem [shape: f32[24,4], index: 1, kind: input, shape index: {}]
  %s2 = inlined_call_operand.vmem [shape: f32[24,9], index: 2, kind: input, shape index: {}]
  %s3 = inlined_call_operand.vmem [shape: f32[8,10], index: 3, kind: input, shape index: {}]
  %s4 = inlined_call_operand.vmem [shape: f32[8,768], index: 4, kind: output, shape index: {}]
  %s5 = sld [smem:[#allocation0]]
  $region26: #{feedforward_forward.1} parent=0
    _
  %s7 = ssub.s32 1, %s5
  %s8 = scalar_select 0, %s7, %s5
  // Predicated region
  $region2: #{feedforward_forward.1} parent=0 // pred_check
    _
  $region3: #{feedforward_forward.1} parent=0 // pred_check_branch
    %10 = sbr.rel (0) target = $region5
  $region4: #{feedforward_forward.1} parent=0 // pred_region
    _
  $region5: #{feedforward_forward.1} parent=0 // pred_fallthru
    _
  // Predicated region
  $region6: #{feedforward_forward.1} parent=0 // pred_check
    _
  $region7: #{feedforward_forward.1} parent=0 // pred_check_branch
    %12 = sbr.rel (0) target = $region9
  $region8: #{feedforward_forward.1} parent=0 // pred_region
    _
  $region9: #{feedforward_forward.1} parent=0 // pred_fallthru
    _
  // Predicated region
  $region10: #{feedforward_forward.1} parent=0 // pred_check
    _
  $region11: #{feedforward_forward.1} parent=0 // pred_check_branch
    %14 = sbr.rel (0) target = $region13
  $region12: #{feedforward_forward.1} parent=0 // pred_region
    _
  $region13: #{feedforward_forward.1} parent=0 // pred_fallthru
    _
  // Predicated region
  $region14: #{feedforward_forward.1} parent=0 // pred_check
    _
  $region15: #{feedforward_forward.1} parent=0 // pred_check_branch
    %16 = sbr.rel (0) target = $region17
  $region16: #{feedforward_forward.1} parent=0 // pred_region
    _
  $region17: #{feedforward_forward.1} parent=0 // pred_fallthru
    _
  %v17 = vld [vmem:[%s1] sm:$0xff]
  %v18 = vld [vmem:[%s1 + $0x8] sm:$0xff]
  %v19 = vld [vmem:[%s1 + $0x10] sm:$0xff]
  %v20 = vld [vmem:[%s0] sm:$0xff]
  %v21 = vld [vmem:[%s0 + $0x8] sm:$0xff]
  %v22 = vld [vmem:[%s0 + $0x10] sm:$0xff]
  %v23 = vld [vmem:[%s0 + $0x18] sm:$0xf]
  %28 = vst [vmem:[#allocation1] ss:$2 sm:$0xff] %v20
  %s29 = scalar_lea.vmem [#allocation1], 16
  %30 = vst [vmem:[%s29] ss:$2 sm:$0xff] %v21
  %s31 = scalar_lea.vmem [#allocation1], 32
  %32 = vst [vmem:[%s31] ss:$2 sm:$0xff] %v22
  %s33 = scalar_lea.vmem [#allocation1], 48
  %34 = vst [vmem:[%s33] ss:$2 sm:$0xff] %v23
  %v35 = vld.sshfl [vmem:[#allocation1] sm:$0xff pattern:$0x75316420]
  %v36 = vld.sshfl [vmem:[#allocation1 + $0x8] sm:$0xff pattern:$0x75316420]
  %v37 = vld.sshfl [vmem:[#allocation1 + $0x10] sm:$0xff pattern:$0x75316420]
  %v38 = vld.sshfl [vmem:[#allocation1 + $0x18] sm:$0xff pattern:$0x75316420]
  %v39 = vld.sshfl [vmem:[#allocation1 + $0x20] sm:$0xff pattern:$0x75316420]
  %v40 = vld.sshfl [vmem:[#allocation1 + $0x28] sm:$0xff pattern:$0x75316420]
  %v41 = vld.sshfl [vmem:[#allocation1 + $0x30] sm:$0xff pattern:$0x75316420]
  %vm42 = vcmask 31744
  %v44 = vsel %vm42, %v17, 0
  %v47 = vsel %vm42, %v18, 0
  %v50 = vsel %vm42, %v19, 0
  %vm52 = vcmask 1043456
  %v53 = vsel %vm52, %v35, 0
  %v55 = vsel %vm52, %v36, 0
  %v57 = vsel %vm52, %v37, 0
  %v59 = vsel %vm52, %v38, 0
  %v61 = vsel %vm52, %v39, 0
  %v63 = vsel %vm52, %v40, 0
  %v65 = vsel %vm52, %v41, 0
  %67 = vmatpush.msra.mxu0 0.0
  %68 = vmatpush.msra.mxu0 0.0
  %69 = vmatpush.msra.mxu0 0.0
  %70 = vmatpush.msra.mxu0 0.0
  %71 = vmatpush.msra.mxu0 0.0
  %72 = vmatpush.msra.mxu0 0.0
  %73 = vmatpush.msra.mxu0 0.0
  %74 = vmatpush.msra.mxu0 0.0
  %75 = vmatpush.msra.mxu0 0.0
  %76 = vmatpush.msra.mxu0 0.0
  %77 = vmatpush.msra.mxu0 0.0
  %78 = vmatpush.msra.mxu0 0.0
  %79 = vmatpush.msra.mxu0 0.0
  %80 = vmatpush.msra.mxu0 0.0
  %81 = vmatpush.msra.mxu0 0.0
  %82 = vmatpush.msra.mxu0 %v53
  %83 = vmatmul.f32.gmra.mxu0 %v44
  %v84 = vpop.f32.mrf.mxu0
  %v85 = vadd.f32 0.0, %v84
  %86 = vmatmul.f32.gmra.mxu0 %v47
  %v87 = vpop.f32.mrf.mxu0
  %v88 = vadd.f32 0.0, %v87
  %89 = vmatmul.f32.gmra.mxu0 %v50
  %v90 = vpop.f32.mrf.mxu0
  %v91 = vadd.f32 0.0, %v90
  %92 = vdwg.mxu0
  %93 = vmatpush.msra.mxu0 0.0
  %94 = vmatpush.msra.mxu0 0.0
  %95 = vmatpush.msra.mxu0 0.0
  %96 = vmatpush.msra.mxu0 0.0
  %97 = vmatpush.msra.mxu0 0.0
  %98 = vmatpush.msra.mxu0 0.0
  %99 = vmatpush.msra.mxu0 0.0
  %100 = vmatpush.msra.mxu0 0.0
  %101 = vmatpush.msra.mxu0 0.0
  %102 = vmatpush.msra.mxu0 0.0
  %103 = vmatpush.msra.mxu0 0.0
  %104 = vmatpush.msra.mxu0 0.0
  %105 = vmatpush.msra.mxu0 0.0
  %106 = vmatpush.msra.mxu0 0.0
  %107 = vmatpush.msra.mxu0 0.0
  %108 = vmatpush.msra.mxu0 %v55
  %109 = vmatmul.f32.gmra.mxu0 %v44
  %v110 = vpop.f32.mrf.mxu0
  %v111 = vadd.f32 0.0, %v110
  %112 = vmatmul.f32.gmra.mxu0 %v47
  %v113 = vpop.f32.mrf.mxu0
  %v114 = vadd.f32 0.0, %v113
  %115 = vmatmul.f32.gmra.mxu0 %v50
  %v116 = vpop.f32.mrf.mxu0
  %v117 = vadd.f32 0.0, %v116
  %118 = vdwg.mxu0
  %119 = vmatpush.msra.mxu0 0.0
  %120 = vmatpush.msra.mxu0 0.0
  %121 = vmatpush.msra.mxu0 0.0
  %122 = vmatpush.msra.mxu0 0.0
  %123 = vmatpush.msra.mxu0 0.0
  %124 = vmatpush.msra.mxu0 0.0
  %125 = vmatpush.msra.mxu0 0.0
  %126 = vmatpush.msra.mxu0 0.0
  %127 = vmatpush.msra.mxu0 0.0
  %128 = vmatpush.msra.mxu0 0.0
  %129 = vmatpush.msra.mxu0 0.0
  %130 = vmatpush.msra.mxu0 0.0
  %131 = vmatpush.msra.mxu0 0.0
  %132 = vmatpush.msra.mxu0 0.0
  %133 = vmatpush.msra.mxu0 0.0
  %134 = vmatpush.msra.mxu0 %v57
  %135 = vmatmul.f32.gmra.mxu0 %v44
  %v136 = vpop.f32.mrf.mxu0
  %v137 = vadd.f32 0.0, %v136
  %138 = vmatmul.f32.gmra.mxu0 %v47
  %v139 = vpop.f32.mrf.mxu0
  %v140 = vadd.f32 0.0, %v139
  %141 = vmatmul.f32.gmra.mxu0 %v50
  %v142 = vpop.f32.mrf.mxu0
  %v143 = vadd.f32 0.0, %v142
  %144 = vdwg.mxu0
  %145 = vmatpush.msra.mxu0 0.0
  %146 = vmatpush.msra.mxu0 0.0
  %147 = vmatpush.msra.mxu0 0.0
  %148 = vmatpush.msra.mxu0 0.0
  %149 = vmatpush.msra.mxu0 0.0
  %150 = vmatpush.msra.mxu0 0.0
  %151 = vmatpush.msra.mxu0 0.0
  %152 = vmatpush.msra.mxu0 0.0
  %153 = vmatpush.msra.mxu0 0.0
  %154 = vmatpush.msra.mxu0 0.0
  %155 = vmatpush.msra.mxu0 0.0
  %156 = vmatpush.msra.mxu0 0.0
  %157 = vmatpush.msra.mxu0 0.0
  %158 = vmatpush.msra.mxu0 0.0
  %159 = vmatpush.msra.mxu0 0.0
  %160 = vmatpush.msra.mxu0 %v59
  %161 = vmatmul.f32.gmra.mxu0 %v44
  %v162 = vpop.f32.mrf.mxu0
  %v163 = vadd.f32 0.0, %v162
  %164 = vmatmul.f32.gmra.mxu0 %v47
  %v165 = vpop.f32.mrf.mxu0
  %v166 = vadd.f32 0.0, %v165
  %167 = vmatmul.f32.gmra.mxu0 %v50
  %v168 = vpop.f32.mrf.mxu0
  %v169 = vadd.f32 0.0, %v168
  %170 = vdwg.mxu0
  %171 = vmatpush.msra.mxu0 0.0
  %172 = vmatpush.msra.mxu0 0.0
  %173 = vmatpush.msra.mxu0 0.0
  %174 = vmatpush.msra.mxu0 0.0
  %175 = vmatpush.msra.mxu0 0.0
  %176 = vmatpush.msra.mxu0 0.0
  %177 = vmatpush.msra.mxu0 0.0
  %178 = vmatpush.msra.mxu0 0.0
  %179 = vmatpush.msra.mxu0 0.0
  %180 = vmatpush.msra.mxu0 0.0
  %181 = vmatpush.msra.mxu0 0.0
  %182 = vmatpush.msra.mxu0 0.0
  %183 = vmatpush.msra.mxu0 0.0
  %184 = vmatpush.msra.mxu0 0.0
  %185 = vmatpush.msra.mxu0 0.0
  %186 = vmatpush.msra.mxu0 %v61
  %187 = vmatmul.f32.gmra.mxu0 %v44
  %v188 = vpop.f32.mrf.mxu0
  %v189 = vadd.f32 0.0, %v188
  %190 = vmatmul.f32.gmra.mxu0 %v47
  %v191 = vpop.f32.mrf.mxu0
  %v192 = vadd.f32 0.0, %v191
  %193 = vmatmul.f32.gmra.mxu0 %v50
  %v194 = vpop.f32.mrf.mxu0
  %v195 = vadd.f32 0.0, %v194
  %196 = vdwg.mxu0
  %197 = vmatpush.msra.mxu0 0.0
  %198 = vmatpush.msra.mxu0 0.0
  %199 = vmatpush.msra.mxu0 0.0
  %200 = vmatpush.msra.mxu0 0.0
  %201 = vmatpush.msra.mxu0 0.0
  %202 = vmatpush.msra.mxu0 0.0
  %203 = vmatpush.msra.mxu0 0.0
  %204 = vmatpush.msra.mxu0 0.0
  %205 = vmatpush.msra.mxu0 0.0
  %206 = vmatpush.msra.mxu0 0.0
  %207 = vmatpush.msra.mxu0 0.0
  %208 = vmatpush.msra.mxu0 0.0
  %209 = vmatpush.msra.mxu0 0.0
  %210 = vmatpush.msra.mxu0 0.0
  %211 = vmatpush.msra.mxu0 0.0
  %212 = vmatpush.msra.mxu0 %v63
  %213 = vmatmul.f32.gmra.mxu0 %v44
  %v214 = vpop.f32.mrf.mxu0
  %v215 = vadd.f32 0.0, %v214
  %216 = vmatmul.f32.gmra.mxu0 %v47
  %v217 = vpop.f32.mrf.mxu0
  %v218 = vadd.f32 0.0, %v217
  %219 = vmatmul.f32.gmra.mxu0 %v50
  %v220 = vpop.f32.mrf.mxu0
  %v221 = vadd.f32 0.0, %v220
  %222 = vdwg.mxu0
  %223 = vmatpush.msra.mxu0 0.0
  %224 = vmatpush.msra.mxu0 0.0
  %225 = vmatpush.msra.mxu0 0.0
  %226 = vmatpush.msra.mxu0 0.0
  %227 = vmatpush.msra.mxu0 0.0
  %228 = vmatpush.msra.mxu0 0.0
  %229 = vmatpush.msra.mxu0 0.0
  %230 = vmatpush.msra.mxu0 0.0
  %231 = vmatpush.msra.mxu0 0.0
  %232 = vmatpush.msra.mxu0 0.0
  %233 = vmatpush.msra.mxu0 0.0
  %234 = vmatpush.msra.mxu0 0.0
  %235 = vmatpush.msra.mxu0 0.0
  %236 = vmatpush.msra.mxu0 0.0
  %237 = vmatpush.msra.mxu0 0.0
  %238 = vmatpush.msra.mxu0 %v65
  %239 = vmatmul.f32.gmra.mxu0 %v44
  %v240 = vpop.f32.mrf.mxu0
  %v241 = vadd.f32 0.0, %v240
  %242 = vmatmul.f32.gmra.mxu0 %v47
  %v243 = vpop.f32.mrf.mxu0
  %v244 = vadd.f32 0.0, %v243
  %245 = vmatmul.f32.gmra.mxu0 %v50
  %v246 = vpop.f32.mrf.mxu0
  %v247 = vadd.f32 0.0, %v246
  %248 = vdwg.mxu0
  %249 = vst [vmem:[#allocation2] sm:$0xff] %v85
  %250 = vst [vmem:[#allocation2 + $0x8] sm:$0xff] %v111
  %251 = vst [vmem:[#allocation2 + $0x10] sm:$0xff] %v137
  %252 = vst [vmem:[#allocation2 + $0x18] sm:$0xff] %v163
  %253 = vst [vmem:[#allocation2 + $0x20] sm:$0xff] %v189
  %254 = vst [vmem:[#allocation2 + $0x28] sm:$0xff] %v215
  %255 = vst [vmem:[#allocation2 + $0x30] sm:$0xff] %v241
  %256 = vst [vmem:[#allocation2 + $0x38] sm:$0xff] %v88
  %257 = vst [vmem:[#allocation2 + $0x40] sm:$0xff] %v114
  %258 = vst [vmem:[#allocation2 + $0x48] sm:$0xff] %v140
  %259 = vst [vmem:[#allocation2 + $0x50] sm:$0xff] %v166
  %260 = vst [vmem:[#allocation2 + $0x58] sm:$0xff] %v192
  %261 = vst [vmem:[#allocation2 + $0x60] sm:$0xff] %v218
  %262 = vst [vmem:[#allocation2 + $0x68] sm:$0xff] %v244
  %263 = vst [vmem:[#allocation2 + $0x70] sm:$0xff] %v91
  %264 = vst [vmem:[#allocation2 + $0x78] sm:$0xff] %v117
  %265 = vst [vmem:[#allocation2 + $0x80] sm:$0xff] %v143
  %266 = vst [vmem:[#allocation2 + $0x88] sm:$0xff] %v169
  %267 = vst [vmem:[#allocation2 + $0x90] sm:$0xff] %v195
  %268 = vst [vmem:[#allocation2 + $0x98] sm:$0xff] %v221
  %269 = vst [vmem:[#allocation2 + $0xa0] sm:$0xff] %v247
  %v270 = vld [vmem:[%s2] sm:$0xff]
  %v271 = vld [vmem:[%s2 + $0x8] sm:$0xff]
  %v272 = vld [vmem:[%s2 + $0x10] sm:$0xff]
  %v273 = vld [vmem:[#allocation2] sm:$0xff]
  %v274 = vld [vmem:[#allocation2 + $0x8] sm:$0xff]
  %v275 = vld [vmem:[#allocation2 + $0x10] sm:$0xff]
  %v276 = vld [vmem:[#allocation2 + $0x18] sm:$0xff]
  %v277 = vld [vmem:[#allocation2 + $0x20] sm:$0xff]
  %v278 = vld [vmem:[#allocation2 + $0x28] sm:$0xff]
  %v279 = vld [vmem:[#allocation2 + $0x38] sm:$0xff]
  %v280 = vld [vmem:[#allocation2 + $0x40] sm:$0xff]
  %v281 = vld [vmem:[#allocation2 + $0x48] sm:$0xff]
  %v282 = vld [vmem:[#allocation2 + $0x50] sm:$0xff]
  %v283 = vld [vmem:[#allocation2 + $0x58] sm:$0xff]
  %v284 = vld [vmem:[#allocation2 + $0x60] sm:$0xff]
  %v285 = vld [vmem:[#allocation2 + $0x70] sm:$0xff]
  %v286 = vld [vmem:[#allocation2 + $0x78] sm:$0xff]
  %v287 = vld [vmem:[#allocation2 + $0x80] sm:$0xff]
  %v288 = vld [vmem:[#allocation2 + $0x88] sm:$0xff]
  %v289 = vld [vmem:[#allocation2 + $0x90] sm:$0xff]
  %v290 = vld [vmem:[#allocation2 + $0x98] sm:$0xff]
  %292 = vset.pattern.permute.xlu0 0
  %293 = vperm.xlu0 %292, %v270
  %v294 = vpop.permute.xlu0 %293
  %297 = vset.pattern.permute.xlu0 0
  %298 = vperm.xlu0 %297, %v271
  %v299 = vpop.permute.xlu0 %298
  %302 = vset.pattern.permute.xlu0 0
  %303 = vperm.xlu0 %302, %v272
  %v304 = vpop.permute.xlu0 %303
  %v306 = vmul.f32 %v294, %v273
  %v307 = vmul.f32 %v294, %v274
  %v308 = vmul.f32 %v294, %v275
  %v309 = vmul.f32 %v294, %v276
  %v310 = vmul.f32 %v294, %v277
  %v311 = vmul.f32 %v294, %v278
  %v312 = vmul.f32 %v299, %v279
  %v313 = vmul.f32 %v299, %v280
  %v314 = vmul.f32 %v299, %v281
  %v315 = vmul.f32 %v299, %v282
  %v316 = vmul.f32 %v299, %v283
  %v317 = vmul.f32 %v299, %v284
  %v318 = vmul.f32 %v304, %v285
  %v319 = vmul.f32 %v304, %v286
  %v320 = vmul.f32 %v304, %v287
  %v321 = vmul.f32 %v304, %v288
  %v322 = vmul.f32 %v304, %v289
  %v323 = vmul.f32 %v304, %v290
  %v324 = vld [vmem:[#allocation2] sm:$0xff]
  %v325 = vld [vmem:[#allocation2 + $0x8] sm:$0xff]
  %v326 = vld [vmem:[#allocation2 + $0x10] sm:$0xff]
  %v327 = vld [vmem:[#allocation2 + $0x18] sm:$0xff]
  %v328 = vld [vmem:[#allocation2 + $0x20] sm:$0xff]
  %v329 = vld [vmem:[#allocation2 + $0x28] sm:$0xff]
  %v330 = vld [vmem:[#allocation2 + $0x30] sm:$0xff]
  %v331 = vld [vmem:[#allocation2 + $0x38] sm:$0xff]
  %v332 = vld [vmem:[#allocation2 + $0x40] sm:$0xff]
  %v333 = vld [vmem:[#allocation2 + $0x48] sm:$0xff]
  %v334 = vld [vmem:[#allocation2 + $0x50] sm:$0xff]
  %v335 = vld [vmem:[#allocation2 + $0x58] sm:$0xff]
  %v336 = vld [vmem:[#allocation2 + $0x60] sm:$0xff]
  %v337 = vld [vmem:[#allocation2 + $0x68] sm:$0xff]
  %v338 = vld [vmem:[#allocation2 + $0x70] sm:$0xff]
  %v339 = vld [vmem:[#allocation2 + $0x78] sm:$0xff]
  %v340 = vld [vmem:[#allocation2 + $0x80] sm:$0xff]
  %v341 = vld [vmem:[#allocation2 + $0x88] sm:$0xff]
  %v342 = vld [vmem:[#allocation2 + $0x90] sm:$0xff]
  %v343 = vld [vmem:[#allocation2 + $0x98] sm:$0xff]
  %v344 = vld [vmem:[#allocation2 + $0xa0] sm:$0xff]
  %345 = vset.pattern.permute.xlu0 1
  %346 = vperm.xlu0 %345, %v270
  %v347 = vpop.permute.xlu0 %346
  %349 = vset.pattern.permute.xlu0 1
  %350 = vperm.xlu0 %349, %v271
  %v351 = vpop.permute.xlu0 %350
  %353 = vset.pattern.permute.xlu0 1
  %354 = vperm.xlu0 %353, %v272
  %v355 = vpop.permute.xlu0 %354
  %v357 = vmul.f32 %v347, %v324
  %v358 = vmul.f32 %v347, %v325
  %v359 = vmul.f32 %v347, %v326
  %v360 = vmul.f32 %v347, %v327
  %v361 = vmul.f32 %v347, %v328
  %v362 = vmul.f32 %v347, %v329
  %v363 = vmul.f32 %v347, %v330
  %v364 = vmul.f32 %v351, %v331
  %v365 = vmul.f32 %v351, %v332
  %v366 = vmul.f32 %v351, %v333
  %v367 = vmul.f32 %v351, %v334
  %v368 = vmul.f32 %v351, %v335
  %v369 = vmul.f32 %v351, %v336
  %v370 = vmul.f32 %v351, %v337
  %v371 = vmul.f32 %v355, %v338
  %v372 = vmul.f32 %v355, %v339
  %v373 = vmul.f32 %v355, %v340
  %v374 = vmul.f32 %v355, %v341
  %v375 = vmul.f32 %v355, %v342
  %v376 = vmul.f32 %v355, %v343
  %v377 = vmul.f32 %v355, %v344
  %399 = vrot.lane.b32.xlu0 %v357, 127
  %v400 = vpop.permute.xlu0 %399
  %401 = vrot.lane.b32.xlu0 %v358, 127
  %v402 = vpop.permute.xlu0 %401
  %403 = vrot.lane.b32.xlu0 %v359, 127
  %v404 = vpop.permute.xlu0 %403
  %405 = vrot.lane.b32.xlu0 %v360, 127
  %v406 = vpop.permute.xlu0 %405
  %407 = vrot.lane.b32.xlu0 %v361, 127
  %v408 = vpop.permute.xlu0 %407
  %409 = vrot.lane.b32.xlu0 %v362, 127
  %v410 = vpop.permute.xlu0 %409
  %411 = vrot.lane.b32.xlu0 %v363, 127
  %v412 = vpop.permute.xlu0 %411
  %413 = vrot.lane.b32.xlu0 %v364, 127
  %v414 = vpop.permute.xlu0 %413
  %415 = vrot.lane.b32.xlu0 %v365, 127
  %v416 = vpop.permute.xlu0 %415
  %417 = vrot.lane.b32.xlu0 %v366, 127
  %v418 = vpop.permute.xlu0 %417
  %419 = vrot.lane.b32.xlu0 %v367, 127
  %v420 = vpop.permute.xlu0 %419
  %421 = vrot.lane.b32.xlu0 %v368, 127
  %v422 = vpop.permute.xlu0 %421
  %423 = vrot.lane.b32.xlu0 %v369, 127
  %v424 = vpop.permute.xlu0 %423
  %425 = vrot.lane.b32.xlu0 %v370, 127
  %v426 = vpop.permute.xlu0 %425
  %427 = vrot.lane.b32.xlu0 %v371, 127
  %v428 = vpop.permute.xlu0 %427
  %429 = vrot.lane.b32.xlu0 %v372, 127
  %v430 = vpop.permute.xlu0 %429
  %431 = vrot.lane.b32.xlu0 %v373, 127
  %v432 = vpop.permute.xlu0 %431
  %433 = vrot.lane.b32.xlu0 %v374, 127
  %v434 = vpop.permute.xlu0 %433
  %435 = vrot.lane.b32.xlu0 %v375, 127
  %v436 = vpop.permute.xlu0 %435
  %437 = vrot.lane.b32.xlu0 %v376, 127
  %v438 = vpop.permute.xlu0 %437
  %439 = vrot.lane.b32.xlu0 %v377, 127
  %v440 = vpop.permute.xlu0 %439
  %vm441 = vcmask 1039360
  %v442 = vsel %vm441, %v400, %v402
  %v443 = vsel %vm441, %v402, %v404
  %v444 = vsel %vm441, %v404, %v406
  %v445 = vsel %vm441, %v406, %v408
  %v446 = vsel %vm441, %v408, %v410
  %v447 = vsel %vm441, %v410, %v412
  %v448 = vsel %vm441, %v414, %v416
  %v449 = vsel %vm441, %v416, %v418
  %v450 = vsel %vm441, %v418, %v420
  %v451 = vsel %vm441, %v420, %v422
  %v452 = vsel %vm441, %v422, %v424
  %v453 = vsel %vm441, %v424, %v426
  %v454 = vsel %vm441, %v428, %v430
  %v455 = vsel %vm441, %v430, %v432
  %v456 = vsel %vm441, %v432, %v434
  %v457 = vsel %vm441, %v434, %v436
  %v458 = vsel %vm441, %v436, %v438
  %v459 = vsel %vm441, %v438, %v440
  %v478 = vadd.f32 %v306, %v442
  %v479 = vadd.f32 %v307, %v443
  %v480 = vadd.f32 %v308, %v444
  %v481 = vadd.f32 %v309, %v445
  %v482 = vadd.f32 %v310, %v446
  %v483 = vadd.f32 %v311, %v447
  %v484 = vadd.f32 %v312, %v448
  %v485 = vadd.f32 %v313, %v449
  %v486 = vadd.f32 %v314, %v450
  %v487 = vadd.f32 %v315, %v451
  %v488 = vadd.f32 %v316, %v452
  %v489 = vadd.f32 %v317, %v453
  %v490 = vadd.f32 %v318, %v454
  %v491 = vadd.f32 %v319, %v455
  %v492 = vadd.f32 %v320, %v456
  %v493 = vadd.f32 %v321, %v457
  %v494 = vadd.f32 %v322, %v458
  %v495 = vadd.f32 %v323, %v459
  %496 = vset.pattern.permute.xlu0 2
  %497 = vperm.xlu0 %496, %v270
  %v498 = vpop.permute.xlu0 %497
  %500 = vset.pattern.permute.xlu0 2
  %501 = vperm.xlu0 %500, %v271
  %v502 = vpop.permute.xlu0 %501
  %504 = vset.pattern.permute.xlu0 2
  %505 = vperm.xlu0 %504, %v272
  %v506 = vpop.permute.xlu0 %505
  %v508 = vmul.f32 %v498, %v324
  %v509 = vmul.f32 %v498, %v325
  %v510 = vmul.f32 %v498, %v326
  %v511 = vmul.f32 %v498, %v327
  %v512 = vmul.f32 %v498, %v328
  %v513 = vmul.f32 %v498, %v329
  %v514 = vmul.f32 %v498, %v330
  %v515 = vmul.f32 %v502, %v331
  %v516 = vmul.f32 %v502, %v332
  %v517 = vmul.f32 %v502, %v333
  %v518 = vmul.f32 %v502, %v334
  %v519 = vmul.f32 %v502, %v335
  %v520 = vmul.f32 %v502, %v336
  %v521 = vmul.f32 %v502, %v337
  %v522 = vmul.f32 %v506, %v338
  %v523 = vmul.f32 %v506, %v339
  %v524 = vmul.f32 %v506, %v340
  %v525 = vmul.f32 %v506, %v341
  %v526 = vmul.f32 %v506, %v342
  %v527 = vmul.f32 %v506, %v343
  %v528 = vmul.f32 %v506, %v344
  %550 = vrot.lane.b32.xlu0 %v508, 126
  %v551 = vpop.permute.xlu0 %550
  %552 = vrot.lane.b32.xlu0 %v509, 126
  %v553 = vpop.permute.xlu0 %552
  %554 = vrot.lane.b32.xlu0 %v510, 126
  %v555 = vpop.permute.xlu0 %554
  %556 = vrot.lane.b32.xlu0 %v511, 126
  %v557 = vpop.permute.xlu0 %556
  %558 = vrot.lane.b32.xlu0 %v512, 126
  %v559 = vpop.permute.xlu0 %558
  %560 = vrot.lane.b32.xlu0 %v513, 126
  %v561 = vpop.permute.xlu0 %560
  %562 = vrot.lane.b32.xlu0 %v514, 126
  %v563 = vpop.permute.xlu0 %562
  %564 = vrot.lane.b32.xlu0 %v515, 126
  %v565 = vpop.permute.xlu0 %564
  %566 = vrot.lane.b32.xlu0 %v516, 126
  %v567 = vpop.permute.xlu0 %566
  %568 = vrot.lane.b32.xlu0 %v517, 126
  %v569 = vpop.permute.xlu0 %568
  %570 = vrot.lane.b32.xlu0 %v518, 126
  %v571 = vpop.permute.xlu0 %570
  %572 = vrot.lane.b32.xlu0 %v519, 126
  %v573 = vpop.permute.xlu0 %572
  %574 = vrot.lane.b32.xlu0 %v520, 126
  %v575 = vpop.permute.xlu0 %574
  %576 = vrot.lane.b32.xlu0 %v521, 126
  %v577 = vpop.permute.xlu0 %576
  %578 = vrot.lane.b32.xlu0 %v522, 126
  %v579 = vpop.permute.xlu0 %578
  %580 = vrot.lane.b32.xlu0 %v523, 126
  %v581 = vpop.permute.xlu0 %580
  %582 = vrot.lane.b32.xlu0 %v524, 126
  %v583 = vpop.permute.xlu0 %582
  %584 = vrot.lane.b32.xlu0 %v525, 126
  %v585 = vpop.permute.xlu0 %584
  %586 = vrot.lane.b32.xlu0 %v526, 126
  %v587 = vpop.permute.xlu0 %586
  %588 = vrot.lane.b32.xlu0 %v527, 126
  %v589 = vpop.permute.xlu0 %588
  %590 = vrot.lane.b32.xlu0 %v528, 126
  %v591 = vpop.permute.xlu0 %590
  %vm592 = vcmask 1031168
  %v593 = vsel %vm592, %v551, %v553
  %v594 = vsel %vm592, %v553, %v555
  %v595 = vsel %vm592, %v555, %v557
  %v596 = vsel %vm592, %v557, %v559
  %v597 = vsel %vm592, %v559, %v561
  %v598 = vsel %vm592, %v561, %v563
  %v599 = vsel %vm592, %v565, %v567
  %v600 = vsel %vm592, %v567, %v569
  %v601 = vsel %vm592, %v569, %v571
  %v602 = vsel %vm592, %v571, %v573
  %v603 = vsel %vm592, %v573, %v575
  %v604 = vsel %vm592, %v575, %v577
  %v605 = vsel %vm592, %v579, %v581
  %v606 = vsel %vm592, %v581, %v583
  %v607 = vsel %vm592, %v583, %v585
  %v608 = vsel %vm592, %v585, %v587
  %v609 = vsel %vm592, %v587, %v589
  %v610 = vsel %vm592, %v589, %v591
  %v629 = vadd.f32 %v478, %v593
  %v630 = vadd.f32 %v479, %v594
  %v631 = vadd.f32 %v480, %v595
  %v632 = vadd.f32 %v481, %v596
  %v633 = vadd.f32 %v482, %v597
  %v634 = vadd.f32 %v483, %v598
  %v635 = vadd.f32 %v484, %v599
  %v636 = vadd.f32 %v485, %v600
  %v637 = vadd.f32 %v486, %v601
  %v638 = vadd.f32 %v487, %v602
  %v639 = vadd.f32 %v488, %v603
  %v640 = vadd.f32 %v489, %v604
  %v641 = vadd.f32 %v490, %v605
  %v642 = vadd.f32 %v491, %v606
  %v643 = vadd.f32 %v492, %v607
  %v644 = vadd.f32 %v493, %v608
  %v645 = vadd.f32 %v494, %v609
  %v646 = vadd.f32 %v495, %v610
  %647 = vset.pattern.permute.xlu0 3
  %648 = vperm.xlu0 %647, %v270
  %v649 = vpop.permute.xlu0 %648
  %651 = vset.pattern.permute.xlu0 3
  %652 = vperm.xlu0 %651, %v271
  %v653 = vpop.permute.xlu0 %652
  %655 = vset.pattern.permute.xlu0 3
  %656 = vperm.xlu0 %655, %v272
  %v657 = vpop.permute.xlu0 %656
  %v659 = vmul.f32 %v649, %v324
  %v660 = vmul.f32 %v649, %v325
  %v661 = vmul.f32 %v649, %v326
  %v662 = vmul.f32 %v649, %v327
  %v663 = vmul.f32 %v649, %v328
  %v664 = vmul.f32 %v649, %v329
  %v665 = vmul.f32 %v649, %v330
  %v666 = vmul.f32 %v653, %v331
  %v667 = vmul.f32 %v653, %v332
  %v668 = vmul.f32 %v653, %v333
  %v669 = vmul.f32 %v653, %v334
  %v670 = vmul.f32 %v653, %v335
  %v671 = vmul.f32 %v653, %v336
  %v672 = vmul.f32 %v653, %v337
  %v673 = vmul.f32 %v657, %v338
  %v674 = vmul.f32 %v657, %v339
  %v675 = vmul.f32 %v657, %v340
  %v676 = vmul.f32 %v657, %v341
  %v677 = vmul.f32 %v657, %v342
  %v678 = vmul.f32 %v657, %v343
  %v679 = vmul.f32 %v657, %v344
  %701 = vrot.lane.b32.xlu0 %v659, 110
  %v702 = vpop.permute.xlu0 %701
  %703 = vrot.lane.b32.xlu0 %v660, 110
  %v704 = vpop.permute.xlu0 %703
  %705 = vrot.lane.b32.xlu0 %v661, 110
  %v706 = vpop.permute.xlu0 %705
  %707 = vrot.lane.b32.xlu0 %v662, 110
  %v708 = vpop.permute.xlu0 %707
  %709 = vrot.lane.b32.xlu0 %v663, 110
  %v710 = vpop.permute.xlu0 %709
  %711 = vrot.lane.b32.xlu0 %v664, 110
  %v712 = vpop.permute.xlu0 %711
  %713 = vrot.lane.b32.xlu0 %v665, 110
  %v714 = vpop.permute.xlu0 %713
  %715 = vrot.lane.b32.xlu0 %v666, 110
  %v716 = vpop.permute.xlu0 %715
  %717 = vrot.lane.b32.xlu0 %v667, 110
  %v718 = vpop.permute.xlu0 %717
  %719 = vrot.lane.b32.xlu0 %v668, 110
  %v720 = vpop.permute.xlu0 %719
  %721 = vrot.lane.b32.xlu0 %v669, 110
  %v722 = vpop.permute.xlu0 %721
  %723 = vrot.lane.b32.xlu0 %v670, 110
  %v724 = vpop.permute.xlu0 %723
  %725 = vrot.lane.b32.xlu0 %v671, 110
  %v726 = vpop.permute.xlu0 %725
  %727 = vrot.lane.b32.xlu0 %v672, 110
  %v728 = vpop.permute.xlu0 %727
  %729 = vrot.lane.b32.xlu0 %v673, 110
  %v730 = vpop.permute.xlu0 %729
  %731 = vrot.lane.b32.xlu0 %v674, 110
  %v732 = vpop.permute.xlu0 %731
  %733 = vrot.lane.b32.xlu0 %v675, 110
  %v734 = vpop.permute.xlu0 %733
  %735 = vrot.lane.b32.xlu0 %v676, 110
  %v736 = vpop.permute.xlu0 %735
  %737 = vrot.lane.b32.xlu0 %v677, 110
  %v738 = vpop.permute.xlu0 %737
  %739 = vrot.lane.b32.xlu0 %v678, 110
  %v740 = vpop.permute.xlu0 %739
  %741 = vrot.lane.b32.xlu0 %v679, 110
  %v742 = vpop.permute.xlu0 %741
  %vm743 = vcmask 900096
  %v744 = vsel %vm743, %v702, %v704
  %v745 = vsel %vm743, %v704, %v706
  %v746 = vsel %vm743, %v706, %v708
  %v747 = vsel %vm743, %v708, %v710
  %v748 = vsel %vm743, %v710, %v712
  %v749 = vsel %vm743, %v712, %v714
  %v750 = vsel %vm743, %v716, %v718
  %v751 = vsel %vm743, %v718, %v720
  %v752 = vsel %vm743, %v720, %v722
  %v753 = vsel %vm743, %v722, %v724
  %v754 = vsel %vm743, %v724, %v726
  %v755 = vsel %vm743, %v726, %v728
  %v756 = vsel %vm743, %v730, %v732
  %v757 = vsel %vm743, %v732, %v734
  %v758 = vsel %vm743, %v734, %v736
  %v759 = vsel %vm743, %v736, %v738
  %v760 = vsel %vm743, %v738, %v740
  %v761 = vsel %vm743, %v740, %v742
  %v780 = vadd.f32 %v629, %v744
  %v781 = vadd.f32 %v630, %v745
  %v782 = vadd.f32 %v631, %v746
  %v783 = vadd.f32 %v632, %v747
  %v784 = vadd.f32 %v633, %v748
  %v785 = vadd.f32 %v634, %v749
  %v786 = vadd.f32 %v635, %v750
  %v787 = vadd.f32 %v636, %v751
  %v788 = vadd.f32 %v637, %v752
  %v789 = vadd.f32 %v638, %v753
  %v790 = vadd.f32 %v639, %v754
  %v791 = vadd.f32 %v640, %v755
  %v792 = vadd.f32 %v641, %v756
  %v793 = vadd.f32 %v642, %v757
  %v794 = vadd.f32 %v643, %v758
  %v795 = vadd.f32 %v644, %v759
  %v796 = vadd.f32 %v645, %v760
  %v797 = vadd.f32 %v646, %v761
  %798 = vset.pattern.permute.xlu0 4
  %799 = vperm.xlu0 %798, %v270
  %v800 = vpop.permute.xlu0 %799
  %802 = vset.pattern.permute.xlu0 4
  %803 = vperm.xlu0 %802, %v271
  %v804 = vpop.permute.xlu0 %803
  %806 = vset.pattern.permute.xlu0 4
  %807 = vperm.xlu0 %806, %v272
  %v808 = vpop.permute.xlu0 %807
  %v810 = vmul.f32 %v800, %v324
  %v811 = vmul.f32 %v800, %v325
  %v812 = vmul.f32 %v800, %v326
  %v813 = vmul.f32 %v800, %v327
  %v814 = vmul.f32 %v800, %v328
  %v815 = vmul.f32 %v800, %v329
  %v816 = vmul.f32 %v800, %v330
  %v817 = vmul.f32 %v804, %v331
  %v818 = vmul.f32 %v804, %v332
  %v819 = vmul.f32 %v804, %v333
  %v820 = vmul.f32 %v804, %v334
  %v821 = vmul.f32 %v804, %v335
  %v822 = vmul.f32 %v804, %v336
  %v823 = vmul.f32 %v804, %v337
  %v824 = vmul.f32 %v808, %v338
  %v825 = vmul.f32 %v808, %v339
  %v826 = vmul.f32 %v808, %v340
  %v827 = vmul.f32 %v808, %v341
  %v828 = vmul.f32 %v808, %v342
  %v829 = vmul.f32 %v808, %v343
  %v830 = vmul.f32 %v808, %v344
  %852 = vrot.lane.b32.xlu0 %v810, 109
  %v853 = vpop.permute.xlu0 %852
  %854 = vrot.lane.b32.xlu0 %v811, 109
  %v855 = vpop.permute.xlu0 %854
  %856 = vrot.lane.b32.xlu0 %v812, 109
  %v857 = vpop.permute.xlu0 %856
  %858 = vrot.lane.b32.xlu0 %v813, 109
  %v859 = vpop.permute.xlu0 %858
  %860 = vrot.lane.b32.xlu0 %v814, 109
  %v861 = vpop.permute.xlu0 %860
  %862 = vrot.lane.b32.xlu0 %v815, 109
  %v863 = vpop.permute.xlu0 %862
  %864 = vrot.lane.b32.xlu0 %v816, 109
  %v865 = vpop.permute.xlu0 %864
  %866 = vrot.lane.b32.xlu0 %v817, 109
  %v867 = vpop.permute.xlu0 %866
  %868 = vrot.lane.b32.xlu0 %v818, 109
  %v869 = vpop.permute.xlu0 %868
  %870 = vrot.lane.b32.xlu0 %v819, 109
  %v871 = vpop.permute.xlu0 %870
  %872 = vrot.lane.b32.xlu0 %v820, 109
  %v873 = vpop.permute.xlu0 %872
  %874 = vrot.lane.b32.xlu0 %v821, 109
  %v875 = vpop.permute.xlu0 %874
  %876 = vrot.lane.b32.xlu0 %v822, 109
  %v877 = vpop.permute.xlu0 %876
  %878 = vrot.lane.b32.xlu0 %v823, 109
  %v879 = vpop.permute.xlu0 %878
  %880 = vrot.lane.b32.xlu0 %v824, 109
  %v881 = vpop.permute.xlu0 %880
  %882 = vrot.lane.b32.xlu0 %v825, 109
  %v883 = vpop.permute.xlu0 %882
  %884 = vrot.lane.b32.xlu0 %v826, 109
  %v885 = vpop.permute.xlu0 %884
  %886 = vrot.lane.b32.xlu0 %v827, 109
  %v887 = vpop.permute.xlu0 %886
  %888 = vrot.lane.b32.xlu0 %v828, 109
  %v889 = vpop.permute.xlu0 %888
  %890 = vrot.lane.b32.xlu0 %v829, 109
  %v891 = vpop.permute.xlu0 %890
  %892 = vrot.lane.b32.xlu0 %v830, 109
  %v893 = vpop.permute.xlu0 %892
  %vm894 = vcmask 891904
  %v895 = vsel %vm894, %v853, %v855
  %v896 = vsel %vm894, %v855, %v857
  %v897 = vsel %vm894, %v857, %v859
  %v898 = vsel %vm894, %v859, %v861
  %v899 = vsel %vm894, %v861, %v863
  %v900 = vsel %vm894, %v863, %v865
  %v901 = vsel %vm894, %v867, %v869
  %v902 = vsel %vm894, %v869, %v871
  %v903 = vsel %vm894, %v871, %v873
  %v904 = vsel %vm894, %v873, %v875
  %v905 = vsel %vm894, %v875, %v877
  %v906 = vsel %vm894, %v877, %v879
  %v907 = vsel %vm894, %v881, %v883
  %v908 = vsel %vm894, %v883, %v885
  %v909 = vsel %vm894, %v885, %v887
  %v910 = vsel %vm894, %v887, %v889
  %v911 = vsel %vm894, %v889, %v891
  %v912 = vsel %vm894, %v891, %v893
  %v931 = vadd.f32 %v780, %v895
  %v932 = vadd.f32 %v781, %v896
  %v933 = vadd.f32 %v782, %v897
  %v934 = vadd.f32 %v783, %v898
  %v935 = vadd.f32 %v784, %v899
  %v936 = vadd.f32 %v785, %v900
  %v937 = vadd.f32 %v786, %v901
  %v938 = vadd.f32 %v787, %v902
  %v939 = vadd.f32 %v788, %v903
  %v940 = vadd.f32 %v789, %v904
  %v941 = vadd.f32 %v790, %v905
  %v942 = vadd.f32 %v791, %v906
  %v943 = vadd.f32 %v792, %v907
  %v944 = vadd.f32 %v793, %v908
  %v945 = vadd.f32 %v794, %v909
  %v946 = vadd.f32 %v795, %v910
  %v947 = vadd.f32 %v796, %v911
  %v948 = vadd.f32 %v797, %v912
  %949 = vset.pattern.permute.xlu0 5
  %950 = vperm.xlu0 %949, %v270
  %v951 = vpop.permute.xlu0 %950
  %953 = vset.pattern.permute.xlu0 5
  %954 = vperm.xlu0 %953, %v271
  %v955 = vpop.permute.xlu0 %954
  %957 = vset.pattern.permute.xlu0 5
  %958 = vperm.xlu0 %957, %v272
  %v959 = vpop.permute.xlu0 %958
  %v961 = vmul.f32 %v951, %v324
  %v962 = vmul.f32 %v951, %v325
  %v963 = vmul.f32 %v951, %v326
  %v964 = vmul.f32 %v951, %v327
  %v965 = vmul.f32 %v951, %v328
  %v966 = vmul.f32 %v951, %v329
  %v967 = vmul.f32 %v951, %v330
  %v968 = vmul.f32 %v955, %v331
  %v969 = vmul.f32 %v955, %v332
  %v970 = vmul.f32 %v955, %v333
  %v971 = vmul.f32 %v955, %v334
  %v972 = vmul.f32 %v955, %v335
  %v973 = vmul.f32 %v955, %v336
  %v974 = vmul.f32 %v955, %v337
  %v975 = vmul.f32 %v959, %v338
  %v976 = vmul.f32 %v959, %v339
  %v977 = vmul.f32 %v959, %v340
  %v978 = vmul.f32 %v959, %v341
  %v979 = vmul.f32 %v959, %v342
  %v980 = vmul.f32 %v959, %v343
  %v981 = vmul.f32 %v959, %v344
  %1003 = vrot.lane.b32.xlu0 %v961, 108
  %v1004 = vpop.permute.xlu0 %1003
  %1005 = vrot.lane.b32.xlu0 %v962, 108
  %v1006 = vpop.permute.xlu0 %1005
  %1007 = vrot.lane.b32.xlu0 %v963, 108
  %v1008 = vpop.permute.xlu0 %1007
  %1009 = vrot.lane.b32.xlu0 %v964, 108
  %v1010 = vpop.permute.xlu0 %1009
  %1011 = vrot.lane.b32.xlu0 %v965, 108
  %v1012 = vpop.permute.xlu0 %1011
  %1013 = vrot.lane.b32.xlu0 %v966, 108
  %v1014 = vpop.permute.xlu0 %1013
  %1015 = vrot.lane.b32.xlu0 %v967, 108
  %v1016 = vpop.permute.xlu0 %1015
  %1017 = vrot.lane.b32.xlu0 %v968, 108
  %v1018 = vpop.permute.xlu0 %1017
  %1019 = vrot.lane.b32.xlu0 %v969, 108
  %v1020 = vpop.permute.xlu0 %1019
  %1021 = vrot.lane.b32.xlu0 %v970, 108
  %v1022 = vpop.permute.xlu0 %1021
  %1023 = vrot.lane.b32.xlu0 %v971, 108
  %v1024 = vpop.permute.xlu0 %1023
  %1025 = vrot.lane.b32.xlu0 %v972, 108
  %v1026 = vpop.permute.xlu0 %1025
  %1027 = vrot.lane.b32.xlu0 %v973, 108
  %v1028 = vpop.permute.xlu0 %1027
  %1029 = vrot.lane.b32.xlu0 %v974, 108
  %v1030 = vpop.permute.xlu0 %1029
  %1031 = vrot.lane.b32.xlu0 %v975, 108
  %v1032 = vpop.permute.xlu0 %1031
  %1033 = vrot.lane.b32.xlu0 %v976, 108
  %v1034 = vpop.permute.xlu0 %1033
  %1035 = vrot.lane.b32.xlu0 %v977, 108
  %v1036 = vpop.permute.xlu0 %1035
  %1037 = vrot.lane.b32.xlu0 %v978, 108
  %v1038 = vpop.permute.xlu0 %1037
  %1039 = vrot.lane.b32.xlu0 %v979, 108
  %v1040 = vpop.permute.xlu0 %1039
  %1041 = vrot.lane.b32.xlu0 %v980, 108
  %v1042 = vpop.permute.xlu0 %1041
  %1043 = vrot.lane.b32.xlu0 %v981, 108
  %v1044 = vpop.permute.xlu0 %1043
  %vm1045 = vcmask 883712
  %v1046 = vsel %vm1045, %v1004, %v1006
  %v1047 = vsel %vm1045, %v1006, %v1008
  %v1048 = vsel %vm1045, %v1008, %v1010
  %v1049 = vsel %vm1045, %v1010, %v1012
  %v1050 = vsel %vm1045, %v1012, %v1014
  %v1051 = vsel %vm1045, %v1014, %v1016
  %v1052 = vsel %vm1045, %v1018, %v1020
  %v1053 = vsel %vm1045, %v1020, %v1022
  %v1054 = vsel %vm1045, %v1022, %v1024
  %v1055 = vsel %vm1045, %v1024, %v1026
  %v1056 = vsel %vm1045, %v1026, %v1028
  %v1057 = vsel %vm1045, %v1028, %v1030
  %v1058 = vsel %vm1045, %v1032, %v1034
  %v1059 = vsel %vm1045, %v1034, %v1036
  %v1060 = vsel %vm1045, %v1036, %v1038
  %v1061 = vsel %vm1045, %v1038, %v1040
  %v1062 = vsel %vm1045, %v1040, %v1042
  %v1063 = vsel %vm1045, %v1042, %v1044
  %v1082 = vadd.f32 %v931, %v1046
  %v1083 = vadd.f32 %v932, %v1047
  %v1084 = vadd.f32 %v933, %v1048
  %v1085 = vadd.f32 %v934, %v1049
  %v1086 = vadd.f32 %v935, %v1050
  %v1087 = vadd.f32 %v936, %v1051
  %v1088 = vadd.f32 %v937, %v1052
  %v1089 = vadd.f32 %v938, %v1053
  %v1090 = vadd.f32 %v939, %v1054
  %v1091 = vadd.f32 %v940, %v1055
  %v1092 = vadd.f32 %v941, %v1056
  %v1093 = vadd.f32 %v942, %v1057
  %v1094 = vadd.f32 %v943, %v1058
  %v1095 = vadd.f32 %v944, %v1059
  %v1096 = vadd.f32 %v945, %v1060
  %v1097 = vadd.f32 %v946, %v1061
  %v1098 = vadd.f32 %v947, %v1062
  %v1099 = vadd.f32 %v948, %v1063
  %1100 = vset.pattern.permute.xlu0 6
  %1101 = vperm.xlu0 %1100, %v270
  %v1102 = vpop.permute.xlu0 %1101
  %1104 = vset.pattern.permute.xlu0 6
  %1105 = vperm.xlu0 %1104, %v271
  %v1106 = vpop.permute.xlu0 %1105
  %1108 = vset.pattern.permute.xlu0 6
  %1109 = vperm.xlu0 %1108, %v272
  %v1110 = vpop.permute.xlu0 %1109
  %v1112 = vmul.f32 %v1102, %v324
  %v1113 = vmul.f32 %v1102, %v325
  %v1114 = vmul.f32 %v1102, %v326
  %v1115 = vmul.f32 %v1102, %v327
  %v1116 = vmul.f32 %v1102, %v328
  %v1117 = vmul.f32 %v1102, %v329
  %v1118 = vmul.f32 %v1102, %v330
  %v1119 = vmul.f32 %v1106, %v331
  %v1120 = vmul.f32 %v1106, %v332
  %v1121 = vmul.f32 %v1106, %v333
  %v1122 = vmul.f32 %v1106, %v334
  %v1123 = vmul.f32 %v1106, %v335
  %v1124 = vmul.f32 %v1106, %v336
  %v1125 = vmul.f32 %v1106, %v337
  %v1126 = vmul.f32 %v1110, %v338
  %v1127 = vmul.f32 %v1110, %v339
  %v1128 = vmul.f32 %v1110, %v340
  %v1129 = vmul.f32 %v1110, %v341
  %v1130 = vmul.f32 %v1110, %v342
  %v1131 = vmul.f32 %v1110, %v343
  %v1132 = vmul.f32 %v1110, %v344
  %1154 = vrot.lane.b32.xlu0 %v1112, 92
  %v1155 = vpop.permute.xlu0 %1154
  %1156 = vrot.lane.b32.xlu0 %v1113, 92
  %v1157 = vpop.permute.xlu0 %1156
  %1158 = vrot.lane.b32.xlu0 %v1114, 92
  %v1159 = vpop.permute.xlu0 %1158
  %1160 = vrot.lane.b32.xlu0 %v1115, 92
  %v1161 = vpop.permute.xlu0 %1160
  %1162 = vrot.lane.b32.xlu0 %v1116, 92
  %v1163 = vpop.permute.xlu0 %1162
  %1164 = vrot.lane.b32.xlu0 %v1117, 92
  %v1165 = vpop.permute.xlu0 %1164
  %1166 = vrot.lane.b32.xlu0 %v1118, 92
  %v1167 = vpop.permute.xlu0 %1166
  %1168 = vrot.lane.b32.xlu0 %v1119, 92
  %v1169 = vpop.permute.xlu0 %1168
  %1170 = vrot.lane.b32.xlu0 %v1120, 92
  %v1171 = vpop.permute.xlu0 %1170
  %1172 = vrot.lane.b32.xlu0 %v1121, 92
  %v1173 = vpop.permute.xlu0 %1172
  %1174 = vrot.lane.b32.xlu0 %v1122, 92
  %v1175 = vpop.permute.xlu0 %1174
  %1176 = vrot.lane.b32.xlu0 %v1123, 92
  %v1177 = vpop.permute.xlu0 %1176
  %1178 = vrot.lane.b32.xlu0 %v1124, 92
  %v1179 = vpop.permute.xlu0 %1178
  %1180 = vrot.lane.b32.xlu0 %v1125, 92
  %v1181 = vpop.permute.xlu0 %1180
  %1182 = vrot.lane.b32.xlu0 %v1126, 92
  %v1183 = vpop.permute.xlu0 %1182
  %1184 = vrot.lane.b32.xlu0 %v1127, 92
  %v1185 = vpop.permute.xlu0 %1184
  %1186 = vrot.lane.b32.xlu0 %v1128, 92
  %v1187 = vpop.permute.xlu0 %1186
  %1188 = vrot.lane.b32.xlu0 %v1129, 92
  %v1189 = vpop.permute.xlu0 %1188
  %1190 = vrot.lane.b32.xlu0 %v1130, 92
  %v1191 = vpop.permute.xlu0 %1190
  %1192 = vrot.lane.b32.xlu0 %v1131, 92
  %v1193 = vpop.permute.xlu0 %1192
  %1194 = vrot.lane.b32.xlu0 %v1132, 92
  %v1195 = vpop.permute.xlu0 %1194
  %vm1196 = vcmask 752640
  %v1197 = vsel %vm1196, %v1155, %v1157
  %v1198 = vsel %vm1196, %v1157, %v1159
  %v1199 = vsel %vm1196, %v1159, %v1161
  %v1200 = vsel %vm1196, %v1161, %v1163
  %v1201 = vsel %vm1196, %v1163, %v1165
  %v1202 = vsel %vm1196, %v1165, %v1167
  %v1203 = vsel %vm1196, %v1169, %v1171
  %v1204 = vsel %vm1196, %v1171, %v1173
  %v1205 = vsel %vm1196, %v1173, %v1175
  %v1206 = vsel %vm1196, %v1175, %v1177
  %v1207 = vsel %vm1196, %v1177, %v1179
  %v1208 = vsel %vm1196, %v1179, %v1181
  %v1209 = vsel %vm1196, %v1183, %v1185
  %v1210 = vsel %vm1196, %v1185, %v1187
  %v1211 = vsel %vm1196, %v1187, %v1189
  %v1212 = vsel %vm1196, %v1189, %v1191
  %v1213 = vsel %vm1196, %v1191, %v1193
  %v1214 = vsel %vm1196, %v1193, %v1195
  %v1233 = vadd.f32 %v1082, %v1197
  %v1234 = vadd.f32 %v1083, %v1198
  %v1235 = vadd.f32 %v1084, %v1199
  %v1236 = vadd.f32 %v1085, %v1200
  %v1237 = vadd.f32 %v1086, %v1201
  %v1238 = vadd.f32 %v1087, %v1202
  %v1239 = vadd.f32 %v1088, %v1203
  %v1240 = vadd.f32 %v1089, %v1204
  %v1241 = vadd.f32 %v1090, %v1205
  %v1242 = vadd.f32 %v1091, %v1206
  %v1243 = vadd.f32 %v1092, %v1207
  %v1244 = vadd.f32 %v1093, %v1208
  %v1245 = vadd.f32 %v1094, %v1209
  %v1246 = vadd.f32 %v1095, %v1210
  %v1247 = vadd.f32 %v1096, %v1211
  %v1248 = vadd.f32 %v1097, %v1212
  %v1249 = vadd.f32 %v1098, %v1213
  %v1250 = vadd.f32 %v1099, %v1214
  %1251 = vset.pattern.permute.xlu0 7
  %1252 = vperm.xlu0 %1251, %v270
  %v1253 = vpop.permute.xlu0 %1252
  %1255 = vset.pattern.permute.xlu0 7
  %1256 = vperm.xlu0 %1255, %v271
  %v1257 = vpop.permute.xlu0 %1256
  %1259 = vset.pattern.permute.xlu0 7
  %1260 = vperm.xlu0 %1259, %v272
  %v1261 = vpop.permute.xlu0 %1260
  %v1263 = vmul.f32 %v1253, %v324
  %v1264 = vmul.f32 %v1253, %v325
  %v1265 = vmul.f32 %v1253, %v326
  %v1266 = vmul.f32 %v1253, %v327
  %v1267 = vmul.f32 %v1253, %v328
  %v1268 = vmul.f32 %v1253, %v329
  %v1269 = vmul.f32 %v1253, %v330
  %v1270 = vmul.f32 %v1257, %v331
  %v1271 = vmul.f32 %v1257, %v332
  %v1272 = vmul.f32 %v1257, %v333
  %v1273 = vmul.f32 %v1257, %v334
  %v1274 = vmul.f32 %v1257, %v335
  %v1275 = vmul.f32 %v1257, %v336
  %v1276 = vmul.f32 %v1257, %v337
  %v1277 = vmul.f32 %v1261, %v338
  %v1278 = vmul.f32 %v1261, %v339
  %v1279 = vmul.f32 %v1261, %v340
  %v1280 = vmul.f32 %v1261, %v341
  %v1281 = vmul.f32 %v1261, %v342
  %v1282 = vmul.f32 %v1261, %v343
  %v1283 = vmul.f32 %v1261, %v344
  %1305 = vrot.lane.b32.xlu0 %v1263, 91
  %v1306 = vpop.permute.xlu0 %1305
  %1307 = vrot.lane.b32.xlu0 %v1264, 91
  %v1308 = vpop.permute.xlu0 %1307
  %1309 = vrot.lane.b32.xlu0 %v1265, 91
  %v1310 = vpop.permute.xlu0 %1309
  %1311 = vrot.lane.b32.xlu0 %v1266, 91
  %v1312 = vpop.permute.xlu0 %1311
  %1313 = vrot.lane.b32.xlu0 %v1267, 91
  %v1314 = vpop.permute.xlu0 %1313
  %1315 = vrot.lane.b32.xlu0 %v1268, 91
  %v1316 = vpop.permute.xlu0 %1315
  %1317 = vrot.lane.b32.xlu0 %v1269, 91
  %v1318 = vpop.permute.xlu0 %1317
  %1319 = vrot.lane.b32.xlu0 %v1270, 91
  %v1320 = vpop.permute.xlu0 %1319
  %1321 = vrot.lane.b32.xlu0 %v1271, 91
  %v1322 = vpop.permute.xlu0 %1321
  %1323 = vrot.lane.b32.xlu0 %v1272, 91
  %v1324 = vpop.permute.xlu0 %1323
  %1325 = vrot.lane.b32.xlu0 %v1273, 91
  %v1326 = vpop.permute.xlu0 %1325
  %1327 = vrot.lane.b32.xlu0 %v1274, 91
  %v1328 = vpop.permute.xlu0 %1327
  %1329 = vrot.lane.b32.xlu0 %v1275, 91
  %v1330 = vpop.permute.xlu0 %1329
  %1331 = vrot.lane.b32.xlu0 %v1276, 91
  %v1332 = vpop.permute.xlu0 %1331
  %1333 = vrot.lane.b32.xlu0 %v1277, 91
  %v1334 = vpop.permute.xlu0 %1333
  %1335 = vrot.lane.b32.xlu0 %v1278, 91
  %v1336 = vpop.permute.xlu0 %1335
  %1337 = vrot.lane.b32.xlu0 %v1279, 91
  %v1338 = vpop.permute.xlu0 %1337
  %1339 = vrot.lane.b32.xlu0 %v1280, 91
  %v1340 = vpop.permute.xlu0 %1339
  %1341 = vrot.lane.b32.xlu0 %v1281, 91
  %v1342 = vpop.permute.xlu0 %1341
  %1343 = vrot.lane.b32.xlu0 %v1282, 91
  %v1344 = vpop.permute.xlu0 %1343
  %1345 = vrot.lane.b32.xlu0 %v1283, 91
  %v1346 = vpop.permute.xlu0 %1345
  %vm1347 = vcmask 744448
  %v1348 = vsel %vm1347, %v1306, %v1308
  %v1349 = vsel %vm1347, %v1308, %v1310
  %v1350 = vsel %vm1347, %v1310, %v1312
  %v1351 = vsel %vm1347, %v1312, %v1314
  %v1352 = vsel %vm1347, %v1314, %v1316
  %v1353 = vsel %vm1347, %v1316, %v1318
  %v1354 = vsel %vm1347, %v1320, %v1322
  %v1355 = vsel %vm1347, %v1322, %v1324
  %v1356 = vsel %vm1347, %v1324, %v1326
  %v1357 = vsel %vm1347, %v1326, %v1328
  %v1358 = vsel %vm1347, %v1328, %v1330
  %v1359 = vsel %vm1347, %v1330, %v1332
  %v1360 = vsel %vm1347, %v1334, %v1336
  %v1361 = vsel %vm1347, %v1336, %v1338
  %v1362 = vsel %vm1347, %v1338, %v1340
  %v1363 = vsel %vm1347, %v1340, %v1342
  %v1364 = vsel %vm1347, %v1342, %v1344
  %v1365 = vsel %vm1347, %v1344, %v1346
  %v1384 = vadd.f32 %v1233, %v1348
  %v1385 = vadd.f32 %v1234, %v1349
  %v1386 = vadd.f32 %v1235, %v1350
  %v1387 = vadd.f32 %v1236, %v1351
  %v1388 = vadd.f32 %v1237, %v1352
  %v1389 = vadd.f32 %v1238, %v1353
  %v1390 = vadd.f32 %v1239, %v1354
  %v1391 = vadd.f32 %v1240, %v1355
  %v1392 = vadd.f32 %v1241, %v1356
  %v1393 = vadd.f32 %v1242, %v1357
  %v1394 = vadd.f32 %v1243, %v1358
  %v1395 = vadd.f32 %v1244, %v1359
  %v1396 = vadd.f32 %v1245, %v1360
  %v1397 = vadd.f32 %v1246, %v1361
  %v1398 = vadd.f32 %v1247, %v1362
  %v1399 = vadd.f32 %v1248, %v1363
  %v1400 = vadd.f32 %v1249, %v1364
  %v1401 = vadd.f32 %v1250, %v1365
  %1402 = vset.pattern.permute.xlu0 8
  %1403 = vperm.xlu0 %1402, %v270
  %v1404 = vpop.permute.xlu0 %1403
  %1406 = vset.pattern.permute.xlu0 8
  %1407 = vperm.xlu0 %1406, %v271
  %v1408 = vpop.permute.xlu0 %1407
  %1410 = vset.pattern.permute.xlu0 8
  %1411 = vperm.xlu0 %1410, %v272
  %v1412 = vpop.permute.xlu0 %1411
  %v1414 = vmul.f32 %v1404, %v324
  %v1415 = vmul.f32 %v1404, %v325
  %v1416 = vmul.f32 %v1404, %v326
  %v1417 = vmul.f32 %v1404, %v327
  %v1418 = vmul.f32 %v1404, %v328
  %v1419 = vmul.f32 %v1404, %v329
  %v1420 = vmul.f32 %v1404, %v330
  %v1421 = vmul.f32 %v1408, %v331
  %v1422 = vmul.f32 %v1408, %v332
  %v1423 = vmul.f32 %v1408, %v333
  %v1424 = vmul.f32 %v1408, %v334
  %v1425 = vmul.f32 %v1408, %v335
  %v1426 = vmul.f32 %v1408, %v336
  %v1427 = vmul.f32 %v1408, %v337
  %v1428 = vmul.f32 %v1412, %v338
  %v1429 = vmul.f32 %v1412, %v339
  %v1430 = vmul.f32 %v1412, %v340
  %v1431 = vmul.f32 %v1412, %v341
  %v1432 = vmul.f32 %v1412, %v342
  %v1433 = vmul.f32 %v1412, %v343
  %v1434 = vmul.f32 %v1412, %v344
  %1456 = vrot.lane.b32.xlu0 %v1414, 90
  %v1457 = vpop.permute.xlu0 %1456
  %1458 = vrot.lane.b32.xlu0 %v1415, 90
  %v1459 = vpop.permute.xlu0 %1458
  %1460 = vrot.lane.b32.xlu0 %v1416, 90
  %v1461 = vpop.permute.xlu0 %1460
  %1462 = vrot.lane.b32.xlu0 %v1417, 90
  %v1463 = vpop.permute.xlu0 %1462
  %1464 = vrot.lane.b32.xlu0 %v1418, 90
  %v1465 = vpop.permute.xlu0 %1464
  %1466 = vrot.lane.b32.xlu0 %v1419, 90
  %v1467 = vpop.permute.xlu0 %1466
  %1468 = vrot.lane.b32.xlu0 %v1420, 90
  %v1469 = vpop.permute.xlu0 %1468
  %1470 = vrot.lane.b32.xlu0 %v1421, 90
  %v1471 = vpop.permute.xlu0 %1470
  %1472 = vrot.lane.b32.xlu0 %v1422, 90
  %v1473 = vpop.permute.xlu0 %1472
  %1474 = vrot.lane.b32.xlu0 %v1423, 90
  %v1475 = vpop.permute.xlu0 %1474
  %1476 = vrot.lane.b32.xlu0 %v1424, 90
  %v1477 = vpop.permute.xlu0 %1476
  %1478 = vrot.lane.b32.xlu0 %v1425, 90
  %v1479 = vpop.permute.xlu0 %1478
  %1480 = vrot.lane.b32.xlu0 %v1426, 90
  %v1481 = vpop.permute.xlu0 %1480
  %1482 = vrot.lane.b32.xlu0 %v1427, 90
  %v1483 = vpop.permute.xlu0 %1482
  %1484 = vrot.lane.b32.xlu0 %v1428, 90
  %v1485 = vpop.permute.xlu0 %1484
  %1486 = vrot.lane.b32.xlu0 %v1429, 90
  %v1487 = vpop.permute.xlu0 %1486
  %1488 = vrot.lane.b32.xlu0 %v1430, 90
  %v1489 = vpop.permute.xlu0 %1488
  %1490 = vrot.lane.b32.xlu0 %v1431, 90
  %v1491 = vpop.permute.xlu0 %1490
  %1492 = vrot.lane.b32.xlu0 %v1432, 90
  %v1493 = vpop.permute.xlu0 %1492
  %1494 = vrot.lane.b32.xlu0 %v1433, 90
  %v1495 = vpop.permute.xlu0 %1494
  %1496 = vrot.lane.b32.xlu0 %v1434, 90
  %v1497 = vpop.permute.xlu0 %1496
  %vm1498 = vcmask 736256
  %v1499 = vsel %vm1498, %v1457, %v1459
  %v1500 = vsel %vm1498, %v1459, %v1461
  %v1501 = vsel %vm1498, %v1461, %v1463
  %v1502 = vsel %vm1498, %v1463, %v1465
  %v1503 = vsel %vm1498, %v1465, %v1467
  %v1504 = vsel %vm1498, %v1467, %v1469
  %v1505 = vsel %vm1498, %v1471, %v1473
  %v1506 = vsel %vm1498, %v1473, %v1475
  %v1507 = vsel %vm1498, %v1475, %v1477
  %v1508 = vsel %vm1498, %v1477, %v1479
  %v1509 = vsel %vm1498, %v1479, %v1481
  %v1510 = vsel %vm1498, %v1481, %v1483
  %v1511 = vsel %vm1498, %v1485, %v1487
  %v1512 = vsel %vm1498, %v1487, %v1489
  %v1513 = vsel %vm1498, %v1489, %v1491
  %v1514 = vsel %vm1498, %v1491, %v1493
  %v1515 = vsel %vm1498, %v1493, %v1495
  %v1516 = vsel %vm1498, %v1495, %v1497
  %v1535 = vadd.f32 %v1384, %v1499
  %v1536 = vadd.f32 %v1385, %v1500
  %v1537 = vadd.f32 %v1386, %v1501
  %v1538 = vadd.f32 %v1387, %v1502
  %v1539 = vadd.f32 %v1388, %v1503
  %v1540 = vadd.f32 %v1389, %v1504
  %v1541 = vadd.f32 %v1390, %v1505
  %v1542 = vadd.f32 %v1391, %v1506
  %v1543 = vadd.f32 %v1392, %v1507
  %v1544 = vadd.f32 %v1393, %v1508
  %v1545 = vadd.f32 %v1394, %v1509
  %v1546 = vadd.f32 %v1395, %v1510
  %v1547 = vadd.f32 %v1396, %v1511
  %v1548 = vadd.f32 %v1397, %v1512
  %v1549 = vadd.f32 %v1398, %v1513
  %v1550 = vadd.f32 %v1399, %v1514
  %v1551 = vadd.f32 %v1400, %v1515
  %v1552 = vadd.f32 %v1401, %v1516
  %v1553 = vmul.f32 %v1535, 0.5
  %v1554 = vmul.f32 %v1536, 0.5
  %v1555 = vmul.f32 %v1537, 0.5
  %v1556 = vmul.f32 %v1538, 0.5
  %v1557 = vmul.f32 %v1539, 0.5
  %v1558 = vmul.f32 %v1540, 0.5
  %v1559 = vmul.f32 %v1541, 0.5
  %v1560 = vmul.f32 %v1542, 0.5
  %v1561 = vmul.f32 %v1543, 0.5
  %v1562 = vmul.f32 %v1544, 0.5
  %v1563 = vmul.f32 %v1545, 0.5
  %v1564 = vmul.f32 %v1546, 0.5
  %v1565 = vmul.f32 %v1535, 0.70710677
  %v1566 = vmul.f32 %v1536, 0.70710677
  %v1567 = vmul.f32 %v1537, 0.70710677
  %v1568 = vmul.f32 %v1538, 0.70710677
  %v1569 = vmul.f32 %v1539, 0.70710677
  %v1570 = vmul.f32 %v1540, 0.70710677
  %v1571 = vmul.f32 %v1541, 0.70710677
  %v1572 = vmul.f32 %v1542, 0.70710677
  %v1573 = vmul.f32 %v1543, 0.70710677
  %v1574 = vmul.f32 %v1544, 0.70710677
  %v1575 = vmul.f32 %v1545, 0.70710677
  %v1576 = vmul.f32 %v1546, 0.70710677
  %v1577 = vand.u32 2147483647, %v1565
  %v1578 = vand.u32 2147483647, %v1566
  %v1579 = vand.u32 2147483647, %v1567
  %v1580 = vand.u32 2147483647, %v1568
  %v1581 = vand.u32 2147483647, %v1569
  %v1582 = vand.u32 2147483647, %v1570
  %v1583 = vand.u32 2147483647, %v1571
  %v1584 = vand.u32 2147483647, %v1572
  %v1585 = vand.u32 2147483647, %v1573
  %v1586 = vand.u32 2147483647, %v1574
  %v1587 = vand.u32 2147483647, %v1575
  %v1588 = vand.u32 2147483647, %v1576
  %v1589 = vmul.f32 %v1577, 0.3275911
  %v1590 = vmul.f32 %v1578, 0.3275911
  %v1591 = vmul.f32 %v1579, 0.3275911
  %v1592 = vmul.f32 %v1580, 0.3275911
  %v1593 = vmul.f32 %v1581, 0.3275911
  %v1594 = vmul.f32 %v1582, 0.3275911
  %v1595 = vmul.f32 %v1583, 0.3275911
  %v1596 = vmul.f32 %v1584, 0.3275911
  %v1597 = vmul.f32 %v1585, 0.3275911
  %v1598 = vmul.f32 %v1586, 0.3275911
  %v1599 = vmul.f32 %v1587, 0.3275911
  %v1600 = vmul.f32 %v1588, 0.3275911
  %v1601 = vadd.f32 %v1589, 1.0
  %v1602 = vadd.f32 %v1590, 1.0
  %v1603 = vadd.f32 %v1591, 1.0
  %v1604 = vadd.f32 %v1592, 1.0
  %v1605 = vadd.f32 %v1593, 1.0
  %v1606 = vadd.f32 %v1594, 1.0
  %v1607 = vadd.f32 %v1595, 1.0
  %v1608 = vadd.f32 %v1596, 1.0
  %v1609 = vadd.f32 %v1597, 1.0
  %v1610 = vadd.f32 %v1598, 1.0
  %v1611 = vadd.f32 %v1599, 1.0
  %v1612 = vadd.f32 %v1600, 1.0
  %v1613 = vrcp.pop %v1601
  %v1614 = vmul.f32 %v1601, %v1613
  %v1615 = vsub.f32 1.0, %v1614
  %v1616 = vmul.f32 %v1613, %v1615
  %v1617 = vadd.f32 %v1613, %v1616
  %vm1618 = vweird.f32 %v1601
  %vm1619 = vweird.f32 %v1613
  %vm1620 = vmor %vm1618, %vm1619
  %v1621 = vsel %vm1620, %v1613, %v1617
  %v1622 = vand.u32 2147483647, %v1601
  %vm1623 = vcmp.eq.f32.partialorder %v1622, 8.507059e+37
  %v1624 = vand.u32 %v1601, 2147483648
  %v1625 = vor.u32 1.1754944e-38, %v1624
  %v1626 = vsel %vm1623, %v1625, %v1621
  %v1627 = vmul.f32 1.0, %v1626
  %v1628 = vrcp.pop %v1602
  %v1629 = vmul.f32 %v1602, %v1628
  %v1630 = vsub.f32 1.0, %v1629
  %v1631 = vmul.f32 %v1628, %v1630
  %v1632 = vadd.f32 %v1628, %v1631
  %vm1633 = vweird.f32 %v1602
  %vm1634 = vweird.f32 %v1628
  %vm1635 = vmor %vm1633, %vm1634
  %v1636 = vsel %vm1635, %v1628, %v1632
  %v1637 = vand.u32 2147483647, %v1602
  %vm1638 = vcmp.eq.f32.partialorder %v1637, 8.507059e+37
  %v1639 = vand.u32 %v1602, 2147483648
  %v1640 = vor.u32 1.1754944e-38, %v1639
  %v1641 = vsel %vm1638, %v1640, %v1636
  %v1642 = vmul.f32 1.0, %v1641
  %v1643 = vrcp.pop %v1603
  %v1644 = vmul.f32 %v1603, %v1643
  %v1645 = vsub.f32 1.0, %v1644
  %v1646 = vmul.f32 %v1643, %v1645
  %v1647 = vadd.f32 %v1643, %v1646
  %vm1648 = vweird.f32 %v1603
  %vm1649 = vweird.f32 %v1643
  %vm1650 = vmor %vm1648, %vm1649
  %v1651 = vsel %vm1650, %v1643, %v1647
  %v1652 = vand.u32 2147483647, %v1603
  %vm1653 = vcmp.eq.f32.partialorder %v1652, 8.507059e+37
  %v1654 = vand.u32 %v1603, 2147483648
  %v1655 = vor.u32 1.1754944e-38, %v1654
  %v1656 = vsel %vm1653, %v1655, %v1651
  %v1657 = vmul.f32 1.0, %v1656
  %v1658 = vrcp.pop %v1604
  %v1659 = vmul.f32 %v1604, %v1658
  %v1660 = vsub.f32 1.0, %v1659
  %v1661 = vmul.f32 %v1658, %v1660
  %v1662 = vadd.f32 %v1658, %v1661
  %vm1663 = vweird.f32 %v1604
  %vm1664 = vweird.f32 %v1658
  %vm1665 = vmor %vm1663, %vm1664
  %v1666 = vsel %vm1665, %v1658, %v1662
  %v1667 = vand.u32 2147483647, %v1604
  %vm1668 = vcmp.eq.f32.partialorder %v1667, 8.507059e+37
  %v1669 = vand.u32 %v1604, 2147483648
  %v1670 = vor.u32 1.1754944e-38, %v1669
  %v1671 = vsel %vm1668, %v1670, %v1666
  %v1672 = vmul.f32 1.0, %v1671
  %v1673 = vrcp.pop %v1605
  %v1674 = vmul.f32 %v1605, %v1673
  %v1675 = vsub.f32 1.0, %v1674
  %v1676 = vmul.f32 %v1673, %v1675
  %v1677 = vadd.f32 %v1673, %v1676
  %vm1678 = vweird.f32 %v1605
  %vm1679 = vweird.f32 %v1673
  %vm1680 = vmor %vm1678, %vm1679
  %v1681 = vsel %vm1680, %v1673, %v1677
  %v1682 = vand.u32 2147483647, %v1605
  %vm1683 = vcmp.eq.f32.partialorder %v1682, 8.507059e+37
  %v1684 = vand.u32 %v1605, 2147483648
  %v1685 = vor.u32 1.1754944e-38, %v1684
  %v1686 = vsel %vm1683, %v1685, %v1681
  %v1687 = vmul.f32 1.0, %v1686
  %v1688 = vrcp.pop %v1606
  %v1689 = vmul.f32 %v1606, %v1688
  %v1690 = vsub.f32 1.0, %v1689
  %v1691 = vmul.f32 %v1688, %v1690
  %v1692 = vadd.f32 %v1688, %v1691
  %vm1693 = vweird.f32 %v1606
  %vm1694 = vweird.f32 %v1688
  %vm1695 = vmor %vm1693, %vm1694
  %v1696 = vsel %vm1695, %v1688, %v1692
  %v1697 = vand.u32 2147483647, %v1606
  %vm1698 = vcmp.eq.f32.partialorder %v1697, 8.507059e+37
  %v1699 = vand.u32 %v1606, 2147483648
  %v1700 = vor.u32 1.1754944e-38, %v1699
  %v1701 = vsel %vm1698, %v1700, %v1696
  %v1702 = vmul.f32 1.0, %v1701
  %v1703 = vrcp.pop %v1607
  %v1704 = vmul.f32 %v1607, %v1703
  %v1705 = vsub.f32 1.0, %v1704
  %v1706 = vmul.f32 %v1703, %v1705
  %v1707 = vadd.f32 %v1703, %v1706
  %vm1708 = vweird.f32 %v1607
  %vm1709 = vweird.f32 %v1703
  %vm1710 = vmor %vm1708, %vm1709
  %v1711 = vsel %vm1710, %v1703, %v1707
  %v1712 = vand.u32 2147483647, %v1607
  %vm1713 = vcmp.eq.f32.partialorder %v1712, 8.507059e+37
  %v1714 = vand.u32 %v1607, 2147483648
  %v1715 = vor.u32 1.1754944e-38, %v1714
  %v1716 = vsel %vm1713, %v1715, %v1711
  %v1717 = vmul.f32 1.0, %v1716
  %v1718 = vrcp.pop %v1608
  %v1719 = vmul.f32 %v1608, %v1718
  %v1720 = vsub.f32 1.0, %v1719
  %v1721 = vmul.f32 %v1718, %v1720
  %v1722 = vadd.f32 %v1718, %v1721
  %vm1723 = vweird.f32 %v1608
  %vm1724 = vweird.f32 %v1718
  %vm1725 = vmor %vm1723, %vm1724
  %v1726 = vsel %vm1725, %v1718, %v1722
  %v1727 = vand.u32 2147483647, %v1608
  %vm1728 = vcmp.eq.f32.partialorder %v1727, 8.507059e+37
  %v1729 = vand.u32 %v1608, 2147483648
  %v1730 = vor.u32 1.1754944e-38, %v1729
  %v1731 = vsel %vm1728, %v1730, %v1726
  %v1732 = vmul.f32 1.0, %v1731
  %v1733 = vrcp.pop %v1609
  %v1734 = vmul.f32 %v1609, %v1733
  %v1735 = vsub.f32 1.0, %v1734
  %v1736 = vmul.f32 %v1733, %v1735
  %v1737 = vadd.f32 %v1733, %v1736
  %vm1738 = vweird.f32 %v1609
  %vm1739 = vweird.f32 %v1733
  %vm1740 = vmor %vm1738, %vm1739
  %v1741 = vsel %vm1740, %v1733, %v1737
  %v1742 = vand.u32 2147483647, %v1609
  %vm1743 = vcmp.eq.f32.partialorder %v1742, 8.507059e+37
  %v1744 = vand.u32 %v1609, 2147483648
  %v1745 = vor.u32 1.1754944e-38, %v1744
  %v1746 = vsel %vm1743, %v1745, %v1741
  %v1747 = vmul.f32 1.0, %v1746
  %v1748 = vrcp.pop %v1610
  %v1749 = vmul.f32 %v1610, %v1748
  %v1750 = vsub.f32 1.0, %v1749
  %v1751 = vmul.f32 %v1748, %v1750
  %v1752 = vadd.f32 %v1748, %v1751
  %vm1753 = vweird.f32 %v1610
  %vm1754 = vweird.f32 %v1748
  %vm1755 = vmor %vm1753, %vm1754
  %v1756 = vsel %vm1755, %v1748, %v1752
  %v1757 = vand.u32 2147483647, %v1610
  %vm1758 = vcmp.eq.f32.partialorder %v1757, 8.507059e+37
  %v1759 = vand.u32 %v1610, 2147483648
  %v1760 = vor.u32 1.1754944e-38, %v1759
  %v1761 = vsel %vm1758, %v1760, %v1756
  %v1762 = vmul.f32 1.0, %v1761
  %v1763 = vrcp.pop %v1611
  %v1764 = vmul.f32 %v1611, %v1763
  %v1765 = vsub.f32 1.0, %v1764
  %v1766 = vmul.f32 %v1763, %v1765
  %v1767 = vadd.f32 %v1763, %v1766
  %vm1768 = vweird.f32 %v1611
  %vm1769 = vweird.f32 %v1763
  %vm1770 = vmor %vm1768, %vm1769
  %v1771 = vsel %vm1770, %v1763, %v1767
  %v1772 = vand.u32 2147483647, %v1611
  %vm1773 = vcmp.eq.f32.partialorder %v1772, 8.507059e+37
  %v1774 = vand.u32 %v1611, 2147483648
  %v1775 = vor.u32 1.1754944e-38, %v1774
  %v1776 = vsel %vm1773, %v1775, %v1771
  %v1777 = vmul.f32 1.0, %v1776
  %v1778 = vrcp.pop %v1612
  %v1779 = vmul.f32 %v1612, %v1778
  %v1780 = vsub.f32 1.0, %v1779
  %v1781 = vmul.f32 %v1778, %v1780
  %v1782 = vadd.f32 %v1778, %v1781
  %vm1783 = vweird.f32 %v1612
  %vm1784 = vweird.f32 %v1778
  %vm1785 = vmor %vm1783, %vm1784
  %v1786 = vsel %vm1785, %v1778, %v1782
  %v1787 = vand.u32 2147483647, %v1612
  %vm1788 = vcmp.eq.f32.partialorder %v1787, 8.507059e+37
  %v1789 = vand.u32 %v1612, 2147483648
  %v1790 = vor.u32 1.1754944e-38, %v1789
  %v1791 = vsel %vm1788, %v1790, %v1786
  %v1792 = vmul.f32 1.0, %v1791
  %v1793 = vmul.f32 %v1627, 1.0614054
  %v1794 = vmul.f32 %v1642, 1.0614054
  %v1795 = vmul.f32 %v1657, 1.0614054
  %v1796 = vmul.f32 %v1672, 1.0614054
  %v1797 = vmul.f32 %v1687, 1.0614054
  %v1798 = vmul.f32 %v1702, 1.0614054
  %v1799 = vmul.f32 %v1717, 1.0614054
  %v1800 = vmul.f32 %v1732, 1.0614054
  %v1801 = vmul.f32 %v1747, 1.0614054
  %v1802 = vmul.f32 %v1762, 1.0614054
  %v1803 = vmul.f32 %v1777, 1.0614054
  %v1804 = vmul.f32 %v1792, 1.0614054
  %v1805 = vadd.f32 %v1793, -1.4531521
  %v1806 = vadd.f32 %v1794, -1.4531521
  %v1807 = vadd.f32 %v1795, -1.4531521
  %v1808 = vadd.f32 %v1796, -1.4531521
  %v1809 = vadd.f32 %v1797, -1.4531521
  %v1810 = vadd.f32 %v1798, -1.4531521
  %v1811 = vadd.f32 %v1799, -1.4531521
  %v1812 = vadd.f32 %v1800, -1.4531521
  %v1813 = vadd.f32 %v1801, -1.4531521
  %v1814 = vadd.f32 %v1802, -1.4531521
  %v1815 = vadd.f32 %v1803, -1.4531521
  %v1816 = vadd.f32 %v1804, -1.4531521
  %v1817 = vmul.f32 %v1627, %v1805
  %v1818 = vmul.f32 %v1642, %v1806
  %v1819 = vmul.f32 %v1657, %v1807
  %v1820 = vmul.f32 %v1672, %v1808
  %v1821 = vmul.f32 %v1687, %v1809
  %v1822 = vmul.f32 %v1702, %v1810
  %v1823 = vmul.f32 %v1717, %v1811
  %v1824 = vmul.f32 %v1732, %v1812
  %v1825 = vmul.f32 %v1747, %v1813
  %v1826 = vmul.f32 %v1762, %v1814
  %v1827 = vmul.f32 %v1777, %v1815
  %v1828 = vmul.f32 %v1792, %v1816
  %v1829 = vadd.f32 %v1817, 1.4214138
  %v1830 = vadd.f32 %v1818, 1.4214138
  %v1831 = vadd.f32 %v1819, 1.4214138
  %v1832 = vadd.f32 %v1820, 1.4214138
  %v1833 = vadd.f32 %v1821, 1.4214138
  %v1834 = vadd.f32 %v1822, 1.4214138
  %v1835 = vadd.f32 %v1823, 1.4214138
  %v1836 = vadd.f32 %v1824, 1.4214138
  %v1837 = vadd.f32 %v1825, 1.4214138
  %v1838 = vadd.f32 %v1826, 1.4214138
  %v1839 = vadd.f32 %v1827, 1.4214138
  %v1840 = vadd.f32 %v1828, 1.4214138
  %v1841 = vmul.f32 %v1627, %v1829
  %v1842 = vmul.f32 %v1642, %v1830
  %v1843 = vmul.f32 %v1657, %v1831
  %v1844 = vmul.f32 %v1672, %v1832
  %v1845 = vmul.f32 %v1687, %v1833
  %v1846 = vmul.f32 %v1702, %v1834
  %v1847 = vmul.f32 %v1717, %v1835
  %v1848 = vmul.f32 %v1732, %v1836
  %v1849 = vmul.f32 %v1747, %v1837
  %v1850 = vmul.f32 %v1762, %v1838
  %v1851 = vmul.f32 %v1777, %v1839
  %v1852 = vmul.f32 %v1792, %v1840
  %v1853 = vadd.f32 %v1841, -0.28449672
  %v1854 = vadd.f32 %v1842, -0.28449672
  %v1855 = vadd.f32 %v1843, -0.28449672
  %v1856 = vadd.f32 %v1844, -0.28449672
  %v1857 = vadd.f32 %v1845, -0.28449672
  %v1858 = vadd.f32 %v1846, -0.28449672
  %v1859 = vadd.f32 %v1847, -0.28449672
  %v1860 = vadd.f32 %v1848, -0.28449672
  %v1861 = vadd.f32 %v1849, -0.28449672
  %v1862 = vadd.f32 %v1850, -0.28449672
  %v1863 = vadd.f32 %v1851, -0.28449672
  %v1864 = vadd.f32 %v1852, -0.28449672
  %v1865 = vmul.f32 %v1627, %v1853
  %v1866 = vmul.f32 %v1642, %v1854
  %v1867 = vmul.f32 %v1657, %v1855
  %v1868 = vmul.f32 %v1672, %v1856
  %v1869 = vmul.f32 %v1687, %v1857
  %v1870 = vmul.f32 %v1702, %v1858
  %v1871 = vmul.f32 %v1717, %v1859
  %v1872 = vmul.f32 %v1732, %v1860
  %v1873 = vmul.f32 %v1747, %v1861
  %v1874 = vmul.f32 %v1762, %v1862
  %v1875 = vmul.f32 %v1777, %v1863
  %v1876 = vmul.f32 %v1792, %v1864
  %v1877 = vadd.f32 %v1865, 0.2548296
  %v1878 = vadd.f32 %v1866, 0.2548296
  %v1879 = vadd.f32 %v1867, 0.2548296
  %v1880 = vadd.f32 %v1868, 0.2548296
  %v1881 = vadd.f32 %v1869, 0.2548296
  %v1882 = vadd.f32 %v1870, 0.2548296
  %v1883 = vadd.f32 %v1871, 0.2548296
  %v1884 = vadd.f32 %v1872, 0.2548296
  %v1885 = vadd.f32 %v1873, 0.2548296
  %v1886 = vadd.f32 %v1874, 0.2548296
  %v1887 = vadd.f32 %v1875, 0.2548296
  %v1888 = vadd.f32 %v1876, 0.2548296
  %v1889 = vmul.f32 %v1627, %v1877
  %v1890 = vmul.f32 %v1642, %v1878
  %v1891 = vmul.f32 %v1657, %v1879
  %v1892 = vmul.f32 %v1672, %v1880
  %v1893 = vmul.f32 %v1687, %v1881
  %v1894 = vmul.f32 %v1702, %v1882
  %v1895 = vmul.f32 %v1717, %v1883
  %v1896 = vmul.f32 %v1732, %v1884
  %v1897 = vmul.f32 %v1747, %v1885
  %v1898 = vmul.f32 %v1762, %v1886
  %v1899 = vmul.f32 %v1777, %v1887
  %v1900 = vmul.f32 %v1792, %v1888
  %v1901 = vsub.f32 0.0, %v1577
  %v1902 = vsub.f32 0.0, %v1578
  %v1903 = vsub.f32 0.0, %v1579
  %v1904 = vsub.f32 0.0, %v1580
  %v1905 = vsub.f32 0.0, %v1581
  %v1906 = vsub.f32 0.0, %v1582
  %v1907 = vsub.f32 0.0, %v1583
  %v1908 = vsub.f32 0.0, %v1584
  %v1909 = vsub.f32 0.0, %v1585
  %v1910 = vsub.f32 0.0, %v1586
  %v1911 = vsub.f32 0.0, %v1587
  %v1912 = vsub.f32 0.0, %v1588
  %v1913 = vmul.f32 %v1901, %v1577
  %v1914 = vmul.f32 %v1902, %v1578
  %v1915 = vmul.f32 %v1903, %v1579
  %v1916 = vmul.f32 %v1904, %v1580
  %v1917 = vmul.f32 %v1905, %v1581
  %v1918 = vmul.f32 %v1906, %v1582
  %v1919 = vmul.f32 %v1907, %v1583
  %v1920 = vmul.f32 %v1908, %v1584
  %v1921 = vmul.f32 %v1909, %v1585
  %v1922 = vmul.f32 %v1910, %v1586
  %v1923 = vmul.f32 %v1911, %v1587
  %v1924 = vmul.f32 %v1912, %v1588
  %v1925 = vmul.f32 %v1913, 1.442695
  %v1926 = vpow.pop %v1925
  %v1927 = vmul.f32 %v1914, 1.442695
  %v1928 = vpow.pop %v1927
  %v1929 = vmul.f32 %v1915, 1.442695
  %v1930 = vpow.pop %v1929
  %v1931 = vmul.f32 %v1916, 1.442695
  %v1932 = vpow.pop %v1931
  %v1933 = vmul.f32 %v1917, 1.442695
  %v1934 = vpow.pop %v1933
  %v1935 = vmul.f32 %v1918, 1.442695
  %v1936 = vpow.pop %v1935
  %v1937 = vmul.f32 %v1919, 1.442695
  %v1938 = vpow.pop %v1937
  %v1939 = vmul.f32 %v1920, 1.442695
  %v1940 = vpow.pop %v1939
  %v1941 = vmul.f32 %v1921, 1.442695
  %v1942 = vpow.pop %v1941
  %v1943 = vmul.f32 %v1922, 1.442695
  %v1944 = vpow.pop %v1943
  %v1945 = vmul.f32 %v1923, 1.442695
  %v1946 = vpow.pop %v1945
  %v1947 = vmul.f32 %v1924, 1.442695
  %v1948 = vpow.pop %v1947
  %v1949 = vmul.f32 %v1889, %v1926
  %v1950 = vmul.f32 %v1890, %v1928
  %v1951 = vmul.f32 %v1891, %v1930
  %v1952 = vmul.f32 %v1892, %v1932
  %v1953 = vmul.f32 %v1893, %v1934
  %v1954 = vmul.f32 %v1894, %v1936
  %v1955 = vmul.f32 %v1895, %v1938
  %v1956 = vmul.f32 %v1896, %v1940
  %v1957 = vmul.f32 %v1897, %v1942
  %v1958 = vmul.f32 %v1898, %v1944
  %v1959 = vmul.f32 %v1899, %v1946
  %v1960 = vmul.f32 %v1900, %v1948
  %v1961 = vsub.f32 1.0, %v1949
  %v1962 = vsub.f32 1.0, %v1950
  %v1963 = vsub.f32 1.0, %v1951
  %v1964 = vsub.f32 1.0, %v1952
  %v1965 = vsub.f32 1.0, %v1953
  %v1966 = vsub.f32 1.0, %v1954
  %v1967 = vsub.f32 1.0, %v1955
  %v1968 = vsub.f32 1.0, %v1956
  %v1969 = vsub.f32 1.0, %v1957
  %v1970 = vsub.f32 1.0, %v1958
  %v1971 = vsub.f32 1.0, %v1959
  %v1972 = vsub.f32 1.0, %v1960
  %vm1973 = vcmp.lt.f32.partialorder %v1565, 0.0
  %vm1974 = vcmp.lt.f32.partialorder %v1566, 0.0
  %vm1975 = vcmp.lt.f32.partialorder %v1567, 0.0
  %vm1976 = vcmp.lt.f32.partialorder %v1568, 0.0
  %vm1977 = vcmp.lt.f32.partialorder %v1569, 0.0
  %vm1978 = vcmp.lt.f32.partialorder %v1570, 0.0
  %vm1979 = vcmp.lt.f32.partialorder %v1571, 0.0
  %vm1980 = vcmp.lt.f32.partialorder %v1572, 0.0
  %vm1981 = vcmp.lt.f32.partialorder %v1573, 0.0
  %vm1982 = vcmp.lt.f32.partialorder %v1574, 0.0
  %vm1983 = vcmp.lt.f32.partialorder %v1575, 0.0
  %vm1984 = vcmp.lt.f32.partialorder %v1576, 0.0
  %v1985 = vsub.f32 0.0, %v1961
  %v1986 = vsub.f32 0.0, %v1962
  %v1987 = vsub.f32 0.0, %v1963
  %v1988 = vsub.f32 0.0, %v1964
  %v1989 = vsub.f32 0.0, %v1965
  %v1990 = vsub.f32 0.0, %v1966
  %v1991 = vsub.f32 0.0, %v1967
  %v1992 = vsub.f32 0.0, %v1968
  %v1993 = vsub.f32 0.0, %v1969
  %v1994 = vsub.f32 0.0, %v1970
  %v1995 = vsub.f32 0.0, %v1971
  %v1996 = vsub.f32 0.0, %v1972
  %v1997 = vsel %vm1973, %v1985, %v1961
  %v1998 = vsel %vm1974, %v1986, %v1962
  %v1999 = vsel %vm1975, %v1987, %v1963
  %v2000 = vsel %vm1976, %v1988, %v1964
  %v2001 = vsel %vm1977, %v1989, %v1965
  %v2002 = vsel %vm1978, %v1990, %v1966
  %v2003 = vsel %vm1979, %v1991, %v1967
  %v2004 = vsel %vm1980, %v1992, %v1968
  %v2005 = vsel %vm1981, %v1993, %v1969
  %v2006 = vsel %vm1982, %v1994, %v1970
  %v2007 = vsel %vm1983, %v1995, %v1971
  %v2008 = vsel %vm1984, %v1996, %v1972
  %v2009 = vadd.f32 %v1997, 1.0
  %v2010 = vadd.f32 %v1998, 1.0
  %v2011 = vadd.f32 %v1999, 1.0
  %v2012 = vadd.f32 %v2000, 1.0
  %v2013 = vadd.f32 %v2001, 1.0
  %v2014 = vadd.f32 %v2002, 1.0
  %v2015 = vadd.f32 %v2003, 1.0
  %v2016 = vadd.f32 %v2004, 1.0
  %v2017 = vadd.f32 %v2005, 1.0
  %v2018 = vadd.f32 %v2006, 1.0
  %v2019 = vadd.f32 %v2007, 1.0
  %v2020 = vadd.f32 %v2008, 1.0
  %v2021 = vmul.f32 %v1553, %v2009
  %v2022 = vmul.f32 %v1554, %v2010
  %v2023 = vmul.f32 %v1555, %v2011
  %v2024 = vmul.f32 %v1556, %v2012
  %v2025 = vmul.f32 %v1557, %v2013
  %v2026 = vmul.f32 %v1558, %v2014
  %v2027 = vmul.f32 %v1559, %v2015
  %v2028 = vmul.f32 %v1560, %v2016
  %v2029 = vmul.f32 %v1561, %v2017
  %v2030 = vmul.f32 %v1562, %v2018
  %v2031 = vmul.f32 %v1563, %v2019
  %v2032 = vmul.f32 %v1564, %v2020
  %vm2045 = vcmask 1045504
  %v2046 = vrot.slane %v1541, 2
  %v2047 = vrot.slane %v1547, 2
  %v2048 = vsel %vm2045, %v2046, %v2047
  %v2049 = vrot.slane %v1542, 2
  %v2050 = vrot.slane %v1548, 2
  %v2051 = vsel %vm2045, %v2049, %v2050
  %v2052 = vrot.slane %v1543, 2
  %v2053 = vrot.slane %v1549, 2
  %v2054 = vsel %vm2045, %v2052, %v2053
  %v2055 = vrot.slane %v1544, 2
  %v2056 = vrot.slane %v1550, 2
  %v2057 = vsel %vm2045, %v2055, %v2056
  %v2058 = vrot.slane %v1545, 2
  %v2059 = vrot.slane %v1551, 2
  %v2060 = vsel %vm2045, %v2058, %v2059
  %v2061 = vrot.slane %v1546, 2
  %v2062 = vrot.slane %v1552, 2
  %v2063 = vsel %vm2045, %v2061, %v2062
  %v2076 = vmul.f32 %v2021, %v2048
  %v2077 = vmul.f32 %v2022, %v2051
  %v2078 = vmul.f32 %v2023, %v2054
  %v2079 = vmul.f32 %v2024, %v2057
  %v2080 = vmul.f32 %v2025, %v2060
  %v2081 = vmul.f32 %v2026, %v2063
  %v2082 = vmul.f32 %v2027, %v2047
  %v2083 = vmul.f32 %v2028, %v2050
  %v2084 = vmul.f32 %v2029, %v2053
  %v2085 = vmul.f32 %v2030, %v2056
  %v2086 = vmul.f32 %v2031, %v2059
  %v2087 = vmul.f32 %v2032, %v2062
  %v2088 = vld [vmem:[%s3] sm:$0xff]
  %vm2089 = vcmask 80896
  %v2091 = vsel %vm2089, %v2088, 0
  %vm2093 = vcmask 1041408
  %v2095 = vsel %vm2093, %v2082, 0
  %v2098 = vsel %vm2093, %v2083, 0
  %v2101 = vsel %vm2093, %v2084, 0
  %v2104 = vsel %vm2093, %v2085, 0
  %v2107 = vsel %vm2093, %v2086, 0
  %v2110 = vsel %vm2093, %v2087, 0
  %2112 = vmatpush.msra.mxu0 0.0
  %2113 = vmatpush.msra.mxu0 0.0
  %2114 = vmatpush.msra.mxu0 0.0
  %2115 = vmatpush.msra.mxu0 0.0
  %2116 = vmatpush.msra.mxu0 0.0
  %2117 = vmatpush.msra.mxu0 0.0
  %2118 = vmatpush.msra.mxu0 0.0
  %2119 = vmatpush.msra.mxu0 0.0
  %2120 = vmatpush.msra.mxu0 0.0
  %2121 = vmatpush.msra.mxu0 0.0
  %2122 = vmatpush.msra.mxu0 0.0
  %2123 = vmatpush.msra.mxu0 0.0
  %2124 = vmatpush.msra.mxu0 0.0
  %2125 = vmatpush.msra.mxu0 0.0
  %2126 = vmatpush.msra.mxu0 %v2095
  %2127 = vmatpush.msra.mxu0 %v2076
  %2128 = vmatmul.f32.gmra.mxu0 %v2091
  %v2129 = vpop.f32.mrf.mxu0
  %v2130 = vadd.f32 0.0, %v2129
  %2131 = vdwg.mxu0
  %2132 = vmatpush.msra.mxu0 0.0
  %2133 = vmatpush.msra.mxu0 0.0
  %2134 = vmatpush.msra.mxu0 0.0
  %2135 = vmatpush.msra.mxu0 0.0
  %2136 = vmatpush.msra.mxu0 0.0
  %2137 = vmatpush.msra.mxu0 0.0
  %2138 = vmatpush.msra.mxu0 0.0
  %2139 = vmatpush.msra.mxu0 0.0
  %2140 = vmatpush.msra.mxu0 0.0
  %2141 = vmatpush.msra.mxu0 0.0
  %2142 = vmatpush.msra.mxu0 0.0
  %2143 = vmatpush.msra.mxu0 0.0
  %2144 = vmatpush.msra.mxu0 0.0
  %2145 = vmatpush.msra.mxu0 0.0
  %2146 = vmatpush.msra.mxu0 %v2098
  %2147 = vmatpush.msra.mxu0 %v2077
  %2148 = vmatmul.f32.gmra.mxu0 %v2091
  %v2149 = vpop.f32.mrf.mxu0
  %v2150 = vadd.f32 0.0, %v2149
  %2151 = vdwg.mxu0
  %2152 = vmatpush.msra.mxu0 0.0
  %2153 = vmatpush.msra.mxu0 0.0
  %2154 = vmatpush.msra.mxu0 0.0
  %2155 = vmatpush.msra.mxu0 0.0
  %2156 = vmatpush.msra.mxu0 0.0
  %2157 = vmatpush.msra.mxu0 0.0
  %2158 = vmatpush.msra.mxu0 0.0
  %2159 = vmatpush.msra.mxu0 0.0
  %2160 = vmatpush.msra.mxu0 0.0
  %2161 = vmatpush.msra.mxu0 0.0
  %2162 = vmatpush.msra.mxu0 0.0
  %2163 = vmatpush.msra.mxu0 0.0
  %2164 = vmatpush.msra.mxu0 0.0
  %2165 = vmatpush.msra.mxu0 0.0
  %2166 = vmatpush.msra.mxu0 %v2101
  %2167 = vmatpush.msra.mxu0 %v2078
  %2168 = vmatmul.f32.gmra.mxu0 %v2091
  %v2169 = vpop.f32.mrf.mxu0
  %v2170 = vadd.f32 0.0, %v2169
  %2171 = vdwg.mxu0
  %2172 = vmatpush.msra.mxu0 0.0
  %2173 = vmatpush.msra.mxu0 0.0
  %2174 = vmatpush.msra.mxu0 0.0
  %2175 = vmatpush.msra.mxu0 0.0
  %2176 = vmatpush.msra.mxu0 0.0
  %2177 = vmatpush.msra.mxu0 0.0
  %2178 = vmatpush.msra.mxu0 0.0
  %2179 = vmatpush.msra.mxu0 0.0
  %2180 = vmatpush.msra.mxu0 0.0
  %2181 = vmatpush.msra.mxu0 0.0
  %2182 = vmatpush.msra.mxu0 0.0
  %2183 = vmatpush.msra.mxu0 0.0
  %2184 = vmatpush.msra.mxu0 0.0
  %2185 = vmatpush.msra.mxu0 0.0
  %2186 = vmatpush.msra.mxu0 %v2104
  %2187 = vmatpush.msra.mxu0 %v2079
  %2188 = vmatmul.f32.gmra.mxu0 %v2091
  %v2189 = vpop.f32.mrf.mxu0
  %v2190 = vadd.f32 0.0, %v2189
  %2191 = vdwg.mxu0
  %2192 = vmatpush.msra.mxu0 0.0
  %2193 = vmatpush.msra.mxu0 0.0
  %2194 = vmatpush.msra.mxu0 0.0
  %2195 = vmatpush.msra.mxu0 0.0
  %2196 = vmatpush.msra.mxu0 0.0
  %2197 = vmatpush.msra.mxu0 0.0
  %2198 = vmatpush.msra.mxu0 0.0
  %2199 = vmatpush.msra.mxu0 0.0
  %2200 = vmatpush.msra.mxu0 0.0
  %2201 = vmatpush.msra.mxu0 0.0
  %2202 = vmatpush.msra.mxu0 0.0
  %2203 = vmatpush.msra.mxu0 0.0
  %2204 = vmatpush.msra.mxu0 0.0
  %2205 = vmatpush.msra.mxu0 0.0
  %2206 = vmatpush.msra.mxu0 %v2107
  %2207 = vmatpush.msra.mxu0 %v2080
  %2208 = vmatmul.f32.gmra.mxu0 %v2091
  %v2209 = vpop.f32.mrf.mxu0
  %v2210 = vadd.f32 0.0, %v2209
  %2211 = vdwg.mxu0
  %2212 = vmatpush.msra.mxu0 0.0
  %2213 = vmatpush.msra.mxu0 0.0
  %2214 = vmatpush.msra.mxu0 0.0
  %2215 = vmatpush.msra.mxu0 0.0
  %2216 = vmatpush.msra.mxu0 0.0
  %2217 = vmatpush.msra.mxu0 0.0
  %2218 = vmatpush.msra.mxu0 0.0
  %2219 = vmatpush.msra.mxu0 0.0
  %2220 = vmatpush.msra.mxu0 0.0
  %2221 = vmatpush.msra.mxu0 0.0
  %2222 = vmatpush.msra.mxu0 0.0
  %2223 = vmatpush.msra.mxu0 0.0
  %2224 = vmatpush.msra.mxu0 0.0
  %2225 = vmatpush.msra.mxu0 0.0
  %2226 = vmatpush.msra.mxu0 %v2110
  %2227 = vmatpush.msra.mxu0 %v2081
  %2228 = vmatmul.f32.gmra.mxu0 %v2091
  %v2229 = vpop.f32.mrf.mxu0
  %v2230 = vadd.f32 0.0, %v2229
  %2231 = vdwg.mxu0
  %2232 = vst [vmem:[%s4] sm:$0xff] %v2130
  %2233 = vst [vmem:[%s4 + $0x8] sm:$0xff] %v2150
  %2234 = vst [vmem:[%s4 + $0x10] sm:$0xff] %v2170
  %2235 = vst [vmem:[%s4 + $0x18] sm:$0xff] %v2190
  %2236 = vst [vmem:[%s4 + $0x20] sm:$0xff] %v2210
  %2237 = vst [vmem:[%s4 + $0x28] sm:$0xff] %v2230
  // Predicated region
  $region18: #{feedforward_forward.1} parent=0 // pred_check
    _
  $region19: #{feedforward_forward.1} parent=0 // pred_check_branch
    %2239 = sbr.rel (0) target = $region21
  $region20: #{feedforward_forward.1} parent=0 // pred_region
    _
  $region21: #{feedforward_forward.1} parent=0 // pred_fallthru
    _
  // Predicated region
  $region22: #{feedforward_forward.1} parent=0 // pred_check
    _
  $region23: #{feedforward_forward.1} parent=0 // pred_check_branch
    %2241 = sbr.rel (0) target = $region25
  $region24: #{feedforward_forward.1} parent=0 // pred_region
    _
  $region25: #{feedforward_forward.1} parent=0 // pred_fallthru
    _

</llo_original>
